<compile_context>
chip_gen: v7x
topology: tpu7x:2x2x1
jax: 0.10.0
libtpu: 0.0.40
codegen_flags: <defaults>
</compile_context>

<pallas_src>
import functools

import jax
import jax.numpy as jnp
from jax.experimental import pallas as pl
from jax.experimental.pallas import tpu as pltpu


def _round_up(x, m):
    return (x + m - 1) // m * m


# ----------------------------------------------------------------------------
# Fused kernel: streamed mean-pool + projection + centroids + attention + head
# ----------------------------------------------------------------------------
def _cafenet_kernel(x_ref, labels_ref, wf_ref, bf_ref, wq_ref, wkv_ref,
                    wc_ref, bc_ref, logits_ref, out_feat_ref, pooled_acc, *,
                    inv_hw, num_classes, feature_dim, mm_dtype):
    step = pl.program_id(0)

    @pl.when(step == 0)
    def _():
        pooled_acc[...] = jnp.zeros_like(pooled_acc)

    # Streamed spatial sum (mean-pool numerator) for this HW tile; f32 accum.
    pooled_acc[...] += jnp.sum(x_ref[...].astype(jnp.float32), axis=-1)

    @pl.when(step == pl.num_programs(0) - 1)
    def _():
        def mm(a, b):
            return jnp.dot(a.astype(mm_dtype), b.astype(mm_dtype),
                           preferred_element_type=jnp.float32)

        D = feature_dim
        Bp = pooled_acc.shape[0]
        Cp = logits_ref.shape[1]                      # lane-padded #classes

        # Proxy extractor: mean pool then a tiny (Bp, C) @ (C, D) projection.
        pooled = pooled_acc[...] * inv_hw             # (Bp, C) f32
        feat = mm(pooled, wf_ref[...]) + bf_ref[...]  # (Bp, D) f32

        # Centroid update from zero-initialized buffers (per-class batch mean).
        labels = labels_ref[...]                                   # (1, Bp)
        class_ids = jax.lax.broadcasted_iota(jnp.int32, (Cp, Bp), 0)
        onehot = (class_ids == labels).astype(jnp.float32)         # (Cp, Bp)
        sums = mm(onehot, feat)                                    # (Cp, D)
        counts = jnp.sum(onehot, axis=-1, keepdims=True)           # (Cp, 1)
        inv_counts = 1.0 / jnp.maximum(counts, 1.0)                # exact
        centers = sums * inv_counts

        # Attention over centroids (scale pre-folded into wq; k|v fused).
        q = mm(feat, wq_ref[...])                                  # (Bp, D)
        kv = mm(centers, wkv_ref[...])                             # (Cp, 2D)
        k_mat = kv[:, :D]
        v_mat = kv[:, D:]
        scores = jax.lax.dot_general(                              # q @ k.T
            q.astype(mm_dtype), k_mat.astype(mm_dtype),
            dimension_numbers=(((1,), (1,)), ((), ())),
            preferred_element_type=jnp.float32)                    # (Bp, Cp) f32
        if Cp > num_classes:
            col_ids = jax.lax.broadcasted_iota(jnp.int32, scores.shape, 1)
            scores = jnp.where(col_ids < num_classes, scores, -1e30)
        scores = scores - jnp.max(scores, axis=-1, keepdims=True)
        e = jnp.exp(scores)
        probs = e * pl.reciprocal(jnp.sum(e, axis=-1, keepdims=True),
                                  approx=True)
        attn_vals = mm(probs, v_mat)                               # (Bp, D)

        # proj == Identity (feature_dim == attention_dim); dropout p=0 == Id.
        out_feat_ref[:, :D] = feat
        out_feat_ref[:, D:] = attn_vals
        # Single classifier matmul over the already-concatenated VMEM slab.
        logits_ref[...] = mm(out_feat_ref[...], wc_ref[...]) + bc_ref[...]


# ----------------------------------------------------------------------------
# Wrapper
# ----------------------------------------------------------------------------
def cafenet_forward(x, labels, params, *, matmul_dtype=jnp.bfloat16,
                    hw_tile=2048):
    """Mirrors CaFeNet.forward: returns (logits, concatenated features)."""
    B, C, H, W = x.shape
    HW = H * W
    D = params["wf"].shape[1]
    NC = params["bc"].shape[1]

    use_bf16 = jnp.dtype(matmul_dtype) == jnp.dtype(jnp.bfloat16)
    Bp = _round_up(B, 16 if use_bf16 else 8)     # sublane-dense batch
    NCp = _round_up(NC, 128)                     # lane-dense logits
    Cpad = _round_up(C, 8)                       # sublane-aligned channels

    # HW tiling for the streamed pool (tile multiple of 128 lanes).
    THW = max(128, _round_up(min(hw_tile, HW), 128))
    HWp = _round_up(HW, THW)
    n_hw = HWp // THW

    stream_dtype = jnp.bfloat16 if use_bf16 else jnp.float32
    w_dtype = matmul_dtype

    # Input stream (Bp, Cpad, HWp); zero padding does not change the pooled sum.
    x3 = jnp.pad(x.reshape(B, C, HW).astype(stream_dtype),
                 ((0, Bp - B), (0, Cpad - C), (0, HWp - HW)))

    if labels is None:
        labels_arr = jnp.full((1, Bp), -1, dtype=jnp.int32)
    else:
        labels_arr = jnp.pad(labels.astype(jnp.int32), (0, Bp - B),
                             constant_values=-1).reshape(1, Bp)

    scale = float(D) ** (-0.5)                           # attention_dim == D
    wf = jnp.pad(params["wf"], ((0, Cpad - C), (0, 0))).astype(w_dtype)
    bf = params["bf"].astype(jnp.float32)
    wq = (params["wq"] * scale).astype(w_dtype)          # fold scale into wq
    wkv = jnp.concatenate([params["wk"], params["wv"]], axis=1).astype(w_dtype)
    wc = jnp.pad(params["wc"], ((0, 0), (0, NCp - NC))).astype(w_dtype)
    bc = jnp.pad(params["bc"], ((0, 0), (0, NCp - NC))).astype(jnp.float32)

    kernel = functools.partial(
        _cafenet_kernel, inv_hw=1.0 / HW, num_classes=NC,
        feature_dim=D, mm_dtype=w_dtype)

    isz = lambda dt: jnp.dtype(dt).itemsize
    w_bytes = (Cpad * D + D * D + D * 2 * D + 2 * D * NCp) * isz(w_dtype)
    resident = (2 * Bp * Cpad * THW * isz(stream_dtype)
                + 2 * (Bp * 4 + w_bytes + (D + NCp) * 4)
                + (Bp * NCp + Bp * 2 * D + Bp * Cpad) * 4)
    vmem_limit = int(min(64 * 2 ** 20, max(32 * 2 ** 20, 2 * resident)))

    flops = 2 * (Bp * Cpad * D + NCp * Bp * D + Bp * D * D + NCp * D * 2 * D
                 + Bp * D * NCp + Bp * NCp * D + Bp * 2 * D * NCp) + Bp * Cpad * HWp
    bytes_accessed = (x3.size * isz(stream_dtype) + w_bytes
                      + (D + NCp + Bp * NCp + Bp * 2 * D) * 4 + Bp * 4)

    logits_p, out_feat_p = pl.pallas_call(
        kernel,
        out_shape=(jax.ShapeDtypeStruct((Bp, NCp), jnp.float32),
                   jax.ShapeDtypeStruct((Bp, 2 * D), jnp.float32)),
        grid_spec=pltpu.PrefetchScalarGridSpec(
            num_scalar_prefetch=0,
            grid=(n_hw,),
            in_specs=[
                pl.BlockSpec((Bp, Cpad, THW), lambda k: (0, 0, k)),  # x stream
                pl.BlockSpec((1, Bp), lambda k: (0, 0)),             # labels
                pl.BlockSpec((Cpad, D), lambda k: (0, 0)),           # wf
                pl.BlockSpec((1, D), lambda k: (0, 0)),              # bf
                pl.BlockSpec((D, D), lambda k: (0, 0)),              # wq*scale
                pl.BlockSpec((D, 2 * D), lambda k: (0, 0)),          # wk|wv
                pl.BlockSpec((2 * D, NCp), lambda k: (0, 0)),        # wc
                pl.BlockSpec((1, NCp), lambda k: (0, 0)),            # bc
            ],
            out_specs=[
                pl.BlockSpec((Bp, NCp), lambda k: (0, 0)),
                pl.BlockSpec((Bp, 2 * D), lambda k: (0, 0)),
            ],
            scratch_shapes=[pltpu.VMEM((Bp, Cpad), jnp.float32)]),
        compiler_params=pltpu.CompilerParams(
            dimension_semantics=("arbitrary",),
            vmem_limit_bytes=vmem_limit),
        cost_estimate=pl.CostEstimate(
            flops=int(flops),
            transcendentals=int(Bp * NCp),
            bytes_accessed=int(bytes_accessed)),
    )(x3, labels_arr, wf, bf, wq, wkv, wc, bc)

    return logits_p[:B, :NC], out_feat_p[:B]


# ----------------------------------------------------------------------------
# Deterministic parameter init (synthetic; shapes follow the module __init__)
# ----------------------------------------------------------------------------
def init_params(key, in_channels, feature_dim, num_classes):
    ks = jax.random.split(key, 8)
    s = 0.05
    return {
        # proxy feature extractor (stand-in for EfficientNet-B0)
        "wf": s * jax.random.normal(ks[0], (in_channels, feature_dim), jnp.float32),
        "bf": s * jax.random.normal(ks[1], (1, feature_dim), jnp.float32),
        # CentroidAttention q/k/v (qkv_bias=False), stored (in, out)
        "wq": s * jax.random.normal(ks[2], (feature_dim, feature_dim), jnp.float32),
        "wk": s * jax.random.normal(ks[3], (feature_dim, feature_dim), jnp.float32),
        "wv": s * jax.random.normal(ks[4], (feature_dim, feature_dim), jnp.float32),
        # classifier: Linear(2*feature_dim, num_classes), stored (in, out)
        "wc": s * jax.random.normal(ks[5], (2 * feature_dim, num_classes), jnp.float32),
        "bc": s * jax.random.normal(ks[6], (1, num_classes), jnp.float32),
    }


# ----------------------------------------------------------------------------
# Pure-JAX reference (same math) for a sanity check
# ----------------------------------------------------------------------------
def _reference(x, labels, params):
    B, C, H, W = x.shape
    pooled = x.reshape(B, C, H * W).mean(-1)
    feat = pooled @ params["wf"] + params["bf"]
    D = feat.shape[1]
    NC = params["bc"].shape[1]
    if labels is None:
        onehot = jnp.zeros((NC, B), jnp.float32)
    else:
        onehot = (labels[None, :] == jnp.arange(NC)[:, None]).astype(jnp.float32)
    sums = onehot @ feat
    counts = onehot.sum(-1, keepdims=True)
    centers = sums / jnp.where(counts > 0, counts, 1.0)
    q = feat @ params["wq"]
    k = centers @ params["wk"]
    v = centers @ params["wv"]
    probs = jax.nn.softmax((q @ k.T) * (float(D) ** -0.5), axis=-1)
    out_feat = jnp.concatenate([feat, probs @ v], axis=-1)
    logits = out_feat @ params["wc"] + params["bc"]
    return logits, out_feat


if __name__ == "__main__":
    key = jax.random.PRNGKey(0)
    kx, kl, kp = jax.random.split(key, 3)

    B, C_in, H, W = 4, 4, 16, 16
    feature_dim = 128          # scaled-down stand-in for 1280
    num_classes = 8

    x = jax.random.normal(kx, (B, C_in, H, W), jnp.float32)
    labels = jax.random.randint(kl, (B,), 0, num_classes, jnp.int32)
    params = init_params(kp, C_in, feature_dim, num_classes)

    ref_logits, ref_feats = _reference(x, labels, params)

    # Default bf16-operand path; hw_tile=128 forces a multi-step (pipelined) grid.
    logits, feats = cafenet_forward(x, labels, params, hw_tile=128)
    jax.block_until_ready((logits, feats))
    assert logits.shape == (B, num_classes)
    assert feats.shape == (B, 2 * feature_dim)
    assert jnp.allclose(logits, ref_logits, atol=2e-2, rtol=2e-2)
    assert jnp.allclose(feats, ref_feats, atol=2e-2, rtol=2e-2)

    # Exact f32-operand path (single HW tile).
    logits32, feats32 = cafenet_forward(x, labels, params,
                                        matmul_dtype=jnp.float32)
    jax.block_until_ready((logits32, feats32))
    assert jnp.allclose(logits32, ref_logits, atol=3e-3, rtol=3e-3)
    assert jnp.allclose(feats32, ref_feats, atol=3e-3, rtol=3e-3)

    # labels=None path (buffers stay zero -> zero centroids).
    logits_nl, feats_nl = cafenet_forward(x, None, params)
    jax.block_until_ready((logits_nl, feats_nl))
    ref_logits_nl, ref_feats_nl = _reference(x, None, params)
    assert jnp.allclose(logits_nl, ref_logits_nl, atol=2e-2, rtol=2e-2)
    assert jnp.allclose(feats_nl, ref_feats_nl, atol=2e-2, rtol=2e-2)

    print("KERNEL_OK")
</pallas_src>

<mosaic_0001>
module attributes {stable_mosaic.version = 11 : i64} {
  func.func @_cafenet_kernel(%arg0: i32, %arg1: memref<16x8x128xbf16, #tpu.memory_space<vmem>>, %arg2: memref<1x16xi32, #tpu.memory_space<vmem>>, %arg3: memref<8x128xbf16, #tpu.memory_space<vmem>>, %arg4: memref<1x128xf32, #tpu.memory_space<vmem>>, %arg5: memref<128x128xbf16, #tpu.memory_space<vmem>>, %arg6: memref<128x256xbf16, #tpu.memory_space<vmem>>, %arg7: memref<256x128xbf16, #tpu.memory_space<vmem>>, %arg8: memref<1x128xf32, #tpu.memory_space<vmem>>, %arg9: memref<16x128xf32, #tpu.memory_space<vmem>>, %arg10: memref<16x256xf32, #tpu.memory_space<vmem>>, %arg11: memref<16x8xf32, #tpu.memory_space<vmem>>) attributes {dimension_semantics = [#tpu.dimension_semantics<arbitrary>], iteration_bounds = array<i64: 2>, scalar_prefetch = 0 : i64, scratch_operands = 1 : i64, tpu.core_type = #tpu.core_type<tc>, window_params = [{transform_indices = @transform_0, window_bounds = array<i64: 16, 8, 128>}, {pipeline_mode = #tpu.pipeline_mode<synchronous>, transform_indices = @transform_1, window_bounds = array<i64: 1, 16>}, {pipeline_mode = #tpu.pipeline_mode<synchronous>, transform_indices = @transform_2, window_bounds = array<i64: 8, 128>}, {pipeline_mode = #tpu.pipeline_mode<synchronous>, transform_indices = @transform_3, window_bounds = array<i64: 1, 128>}, {pipeline_mode = #tpu.pipeline_mode<synchronous>, transform_indices = @transform_4, window_bounds = array<i64: 128, 128>}, {pipeline_mode = #tpu.pipeline_mode<synchronous>, transform_indices = @transform_5, window_bounds = array<i64: 128, 256>}, {pipeline_mode = #tpu.pipeline_mode<synchronous>, transform_indices = @transform_6, window_bounds = array<i64: 256, 128>}, {pipeline_mode = #tpu.pipeline_mode<synchronous>, transform_indices = @transform_7, window_bounds = array<i64: 1, 128>}, {pipeline_mode = #tpu.pipeline_mode<synchronous>, transform_indices = @transform_8, window_bounds = array<i64: 16, 128>}, {pipeline_mode = #tpu.pipeline_mode<synchronous>, transform_indices = @transform_9, window_bounds = array<i64: 16, 256>}]} {
    %c0_i32 = arith.constant 0 : i32
    %0 = arith.cmpi eq, %arg0, %c0_i32 : i32
    %1 = arith.extui %0 : i1 to i32
    %c0_i32_0 = arith.constant 0 : i32
    %2 = arith.cmpi ne, %1, %c0_i32_0 : i32
    scf.if %2 {
      %cst_8 = arith.constant 0.000000e+00 : f32
      %12 = vector.broadcast %cst_8 : f32 to vector<16x8xf32>
      %c0_9 = arith.constant 0 : index
      %c0_10 = arith.constant 0 : index
      %13 = vector.load %arg11[%c0_9, %c0_10] : memref<16x8xf32, #tpu.memory_space<vmem>>, vector<16x8xf32>
      tpu.vector_store %arg11[%c0_9, %c0_10], %12 {strides = array<i32>} : memref<16x8xf32, #tpu.memory_space<vmem>>, vector<16x8xf32>,
    } else {
    }
    %c0 = arith.constant 0 : index
    %c0_1 = arith.constant 0 : index
    %3 = vector.load %arg11[%c0, %c0_1] : memref<16x8xf32, #tpu.memory_space<vmem>>, vector<16x8xf32>
    %c0_2 = arith.constant 0 : index
    %c0_3 = arith.constant 0 : index
    %c0_4 = arith.constant 0 : index
    %4 = vector.load %arg1[%c0_2, %c0_3, %c0_4] : memref<16x8x128xbf16, #tpu.memory_space<vmem>>, vector<16x8x128xbf16>
    %5 = arith.extf %4 : vector<16x8x128xbf16> to vector<16x8x128xf32>
    %cst = arith.constant dense<0.000000e+00> : vector<16x8xf32>
    %6 = vector.multi_reduction <add>, %5, %cst [2] : vector<16x8x128xf32> to vector<16x8xf32>
    %7 = arith.addf %3, %6 : vector<16x8xf32>
    %c0_5 = arith.constant 0 : index
    %c0_6 = arith.constant 0 : index
    %8 = vector.load %arg11[%c0_5, %c0_6] : memref<16x8xf32, #tpu.memory_space<vmem>>, vector<16x8xf32>
    tpu.vector_store %arg11[%c0_5, %c0_6], %7 {strides = array<i32>} : memref<16x8xf32, #tpu.memory_space<vmem>>, vector<16x8xf32>,
    %c1_i32 = arith.constant 1 : i32
    %9 = arith.cmpi eq, %arg0, %c1_i32 : i32
    %10 = arith.extui %9 : i1 to i32
    %c0_i32_7 = arith.constant 0 : i32
    %11 = arith.cmpi ne, %10, %c0_i32_7 : i32
    scf.if %11 {
      %c0_8 = arith.constant 0 : index
      %c0_9 = arith.constant 0 : index
      %12 = vector.load %arg11[%c0_8, %c0_9] : memref<16x8xf32, #tpu.memory_space<vmem>>, vector<16x8xf32>
      %cst_10 = arith.constant 3.906250e-03 : f32
      %13 = vector.broadcast %cst_10 : f32 to vector<16x8xf32>
      %14 = arith.mulf %12, %13 : vector<16x8xf32>
      %c0_11 = arith.constant 0 : index
      %c0_12 = arith.constant 0 : index
      %15 = vector.load %arg3[%c0_11, %c0_12] : memref<8x128xbf16, #tpu.memory_space<vmem>>, vector<8x128xbf16>
      %16 = arith.truncf %14 : vector<16x8xf32> to vector<16x8xbf16>
      %cst_13 = arith.constant dense<0.000000e+00> : vector<16x128xf32>
      %17 = tpu.matmul %16, %15, %cst_13 {dimension_numbers = #tpu.dot_dimension_numbers<[1], [0], [0], [1], [0, 0, 1, 1], [], []>} : vector<16x8xbf16>, vector<8x128xbf16>, vector<16x128xf32> -> vector<16x128xf32>
      %c0_14 = arith.constant 0 : index
      %c0_15 = arith.constant 0 : index
      %18 = vector.load %arg4[%c0_14, %c0_15] : memref<1x128xf32, #tpu.memory_space<vmem>>, vector<1x128xf32>
      %19 = vector.broadcast %18 : vector<1x128xf32> to vector<16x128xf32>
      %20 = arith.addf %17, %19 : vector<16x128xf32>
      %c0_16 = arith.constant 0 : index
      %c0_17 = arith.constant 0 : index
      %21 = vector.load %arg2[%c0_16, %c0_17] : memref<1x16xi32, #tpu.memory_space<vmem>>, vector<1x16xi32>
      %22 = tpu.iota {dimensions = array<i32: 0>} : vector<128x16xi32>
      %23 = vector.broadcast %21 : vector<1x16xi32> to vector<128x16xi32>
      %24 = arith.cmpi eq, %22, %23 : vector<128x16xi32>
      %25 = arith.extui %24 : vector<128x16xi1> to vector<128x16xi32>
      %26 = arith.sitofp %25 : vector<128x16xi32> to vector<128x16xf32>
      %27 = arith.truncf %26 : vector<128x16xf32> to vector<128x16xbf16>
      %28 = arith.truncf %20 : vector<16x128xf32> to vector<16x128xbf16>
      %cst_18 = arith.constant dense<0.000000e+00> : vector<128x128xf32>
      %29 = tpu.matmul %27, %28, %cst_18 {dimension_numbers = #tpu.dot_dimension_numbers<[1], [0], [0], [1], [0, 0, 1, 1], [], []>} : vector<128x16xbf16>, vector<16x128xbf16>, vector<128x128xf32> -> vector<128x128xf32>
      %cst_19 = arith.constant dense<0.000000e+00> : vector<128xf32>
      %30 = vector.multi_reduction <add>, %26, %cst_19 [1] : vector<128x16xf32> to vector<128xf32>
      %31 = vector.shape_cast %30 : vector<128xf32> to vector<128x1xf32>
      %cst_20 = arith.constant 1.000000e+00 : f32
      %32 = vector.broadcast %cst_20 : f32 to vector<128x1xf32>
      %33 = arith.maximumf %31, %32 : vector<128x1xf32>
      %cst_21 = arith.constant 1.000000e+00 : f32
      %34 = vector.broadcast %cst_21 : f32 to vector<128x1xf32>
      %35 = arith.divf %34, %33 : vector<128x1xf32>
      %36 = vector.broadcast %35 : vector<128x1xf32> to vector<128x128xf32>
      %37 = arith.mulf %29, %36 : vector<128x128xf32>
      %c0_22 = arith.constant 0 : index
      %c0_23 = arith.constant 0 : index
      %38 = vector.load %arg5[%c0_22, %c0_23] : memref<128x128xbf16, #tpu.memory_space<vmem>>, vector<128x128xbf16>
      %39 = arith.truncf %20 : vector<16x128xf32> to vector<16x128xbf16>
      %cst_24 = arith.constant dense<0.000000e+00> : vector<16x128xf32>
      %40 = tpu.matmul %39, %38, %cst_24 {dimension_numbers = #tpu.dot_dimension_numbers<[1], [0], [0], [1], [0, 0, 1, 1], [], []>} : vector<16x128xbf16>, vector<128x128xbf16>, vector<16x128xf32> -> vector<16x128xf32>
      %c0_25 = arith.constant 0 : index
      %c0_26 = arith.constant 0 : index
      %41 = vector.load %arg6[%c0_25, %c0_26] : memref<128x256xbf16, #tpu.memory_space<vmem>>, vector<128x256xbf16>
      %42 = arith.truncf %37 : vector<128x128xf32> to vector<128x128xbf16>
      %cst_27 = arith.constant dense<0.000000e+00> : vector<128x256xf32>
      %43 = tpu.matmul %42, %41, %cst_27 {dimension_numbers = #tpu.dot_dimension_numbers<[1], [0], [0], [1], [0, 0, 1, 1], [], []>} : vector<128x128xbf16>, vector<128x256xbf16>, vector<128x256xf32> -> vector<128x256xf32>
      %44 = vector.extract_strided_slice %43 {offsets = [0, 0], sizes = [128, 128], strides = [1, 1]} : vector<128x256xf32> to vector<128x128xf32>
      %45 = vector.extract_strided_slice %43 {offsets = [0, 128], sizes = [128, 128], strides = [1, 1]} : vector<128x256xf32> to vector<128x128xf32>
      %46 = arith.truncf %40 : vector<16x128xf32> to vector<16x128xbf16>
      %47 = arith.truncf %44 : vector<128x128xf32> to vector<128x128xbf16>
      %cst_28 = arith.constant dense<0.000000e+00> : vector<16x128xf32>
      %48 = tpu.matmul %46, %47, %cst_28 {dimension_numbers = #tpu.dot_dimension_numbers<[1], [1], [0], [0], [0, 0, 1, 0], [], []>} : vector<16x128xbf16>, vector<128x128xbf16>, vector<16x128xf32> -> vector<16x128xf32>
      %49 = tpu.iota {dimensions = array<i32: 1>} : vector<16x128xi32>
      %c8_i32 = arith.constant 8 : i32
      %50 = vector.broadcast %c8_i32 : i32 to vector<16x128xi32>
      %51 = arith.cmpi slt, %49, %50 : vector<16x128xi32>
      %cst_29 = arith.constant -1.000000e+30 : f32
      %52 = vector.broadcast %cst_29 : f32 to vector<16x128xf32>
      %53 = arith.select %51, %48, %52 : vector<16x128xi1>, vector<16x128xf32>
      %cst_30 = arith.constant dense<0xFF800000> : vector<16xf32>
      %54 = vector.multi_reduction <maximumf>, %53, %cst_30 [1] : vector<16x128xf32> to vector<16xf32>
      %55 = vector.shape_cast %54 : vector<16xf32> to vector<16x1xf32>
      %56 = vector.broadcast %55 : vector<16x1xf32> to vector<16x128xf32>
      %57 = arith.subf %53, %56 : vector<16x128xf32>
      %58 = math.exp %57 : vector<16x128xf32>
      %cst_31 = arith.constant dense<0.000000e+00> : vector<16xf32>
      %59 = vector.multi_reduction <add>, %58, %cst_31 [1] : vector<16x128xf32> to vector<16xf32>
      %60 = vector.shape_cast %59 : vector<16xf32> to vector<16x1xf32>
      %61 = tpu.reciprocal %60 {approx = true} : vector<16x1xf32> -> vector<16x1xf32>
      %62 = vector.broadcast %61 : vector<16x1xf32> to vector<16x128xf32>
      %63 = arith.mulf %58, %62 : vector<16x128xf32>
      %64 = arith.truncf %63 : vector<16x128xf32> to vector<16x128xbf16>
      %65 = arith.truncf %45 : vector<128x128xf32> to vector<128x128xbf16>
      %cst_32 = arith.constant dense<0.000000e+00> : vector<16x128xf32>
      %66 = tpu.matmul %64, %65, %cst_32 {dimension_numbers = #tpu.dot_dimension_numbers<[1], [0], [0], [1], [0, 0, 1, 1], [], []>} : vector<16x128xbf16>, vector<128x128xbf16>, vector<16x128xf32> -> vector<16x128xf32>
      %c0_33 = arith.constant 0 : index
      %c0_34 = arith.constant 0 : index
      %67 = vector.load %arg10[%c0_33, %c0_34] : memref<16x256xf32, #tpu.memory_space<vmem>>, vector<16x128xf32>
      tpu.vector_store %arg10[%c0_33, %c0_34], %20 {strides = array<i32>} : memref<16x256xf32, #tpu.memory_space<vmem>>, vector<16x128xf32>,
      %c0_35 = arith.constant 0 : index
      %c128 = arith.constant 128 : index
      %68 = vector.load %arg10[%c0_35, %c128] : memref<16x256xf32, #tpu.memory_space<vmem>>, vector<16x128xf32>
      tpu.vector_store %arg10[%c0_35, %c128], %66 {strides = array<i32>} : memref<16x256xf32, #tpu.memory_space<vmem>>, vector<16x128xf32>,
      %c0_36 = arith.constant 0 : index
      %c0_37 = arith.constant 0 : index
      %69 = vector.load %arg10[%c0_36, %c0_37] : memref<16x256xf32, #tpu.memory_space<vmem>>, vector<16x256xf32>
      %c0_38 = arith.constant 0 : index
      %c0_39 = arith.constant 0 : index
      %70 = vector.load %arg7[%c0_38, %c0_39] : memref<256x128xbf16, #tpu.memory_space<vmem>>, vector<256x128xbf16>
      %71 = arith.truncf %69 : vector<16x256xf32> to vector<16x256xbf16>
      %cst_40 = arith.constant dense<0.000000e+00> : vector<16x128xf32>
      %72 = tpu.matmul %71, %70, %cst_40 {dimension_numbers = #tpu.dot_dimension_numbers<[1], [0], [0], [1], [0, 0, 1, 1], [], []>} : vector<16x256xbf16>, vector<256x128xbf16>, vector<16x128xf32> -> vector<16x128xf32>
      %c0_41 = arith.constant 0 : index
      %c0_42 = arith.constant 0 : index
      %73 = vector.load %arg8[%c0_41, %c0_42] : memref<1x128xf32, #tpu.memory_space<vmem>>, vector<1x128xf32>
      %74 = vector.broadcast %73 : vector<1x128xf32> to vector<16x128xf32>
      %75 = arith.addf %72, %74 : vector<16x128xf32>
      %c0_43 = arith.constant 0 : index
      %c0_44 = arith.constant 0 : index
      %76 = vector.load %arg9[%c0_43, %c0_44] : memref<16x128xf32, #tpu.memory_space<vmem>>, vector<16x128xf32>
      tpu.vector_store %arg9[%c0_43, %c0_44], %75 {strides = array<i32>} : memref<16x128xf32, #tpu.memory_space<vmem>>, vector<16x128xf32>,
    } else {
    }
    return
  }
  func.func @transform_0(%arg0: i32) -> (i32, i32, i32) {
    %c0_i32 = arith.constant 0 : i32
    %c0_i32_0 = arith.constant 0 : i32
    %c0_i32_1 = arith.constant 0 : i32
    return %c0_i32, %c0_i32_0, %arg0 : i32, i32, i32
  }
  func.func @transform_1(%arg0: i32) -> (i32, i32) {
    %c0_i32 = arith.constant 0 : i32
    %c0_i32_0 = arith.constant 0 : i32
    %c0_i32_1 = arith.constant 0 : i32
    return %c0_i32, %c0_i32_0 : i32, i32
  }
  func.func @transform_2(%arg0: i32) -> (i32, i32) {
    %c0_i32 = arith.constant 0 : i32
    %c0_i32_0 = arith.constant 0 : i32
    %c0_i32_1 = arith.constant 0 : i32
    return %c0_i32, %c0_i32_0 : i32, i32
  }
  func.func @transform_3(%arg0: i32) -> (i32, i32) {
    %c0_i32 = arith.constant 0 : i32
    %c0_i32_0 = arith.constant 0 : i32
    %c0_i32_1 = arith.constant 0 : i32
    return %c0_i32, %c0_i32_0 : i32, i32
  }
  func.func @transform_4(%arg0: i32) -> (i32, i32) {
    %c0_i32 = arith.constant 0 : i32
    %c0_i32_0 = arith.constant 0 : i32
    %c0_i32_1 = arith.constant 0 : i32
    return %c0_i32, %c0_i32_0 : i32, i32
  }
  func.func @transform_5(%arg0: i32) -> (i32, i32) {
    %c0_i32 = arith.constant 0 : i32
    %c0_i32_0 = arith.constant 0 : i32
    %c0_i32_1 = arith.constant 0 : i32
    return %c0_i32, %c0_i32_0 : i32, i32
  }
  func.func @transform_6(%arg0: i32) -> (i32, i32) {
    %c0_i32 = arith.constant 0 : i32
    %c0_i32_0 = arith.constant 0 : i32
    %c0_i32_1 = arith.constant 0 : i32
    return %c0_i32, %c0_i32_0 : i32, i32
  }
  func.func @transform_7(%arg0: i32) -> (i32, i32) {
    %c0_i32 = arith.constant 0 : i32
    %c0_i32_0 = arith.constant 0 : i32
    %c0_i32_1 = arith.constant 0 : i32
    return %c0_i32, %c0_i32_0 : i32, i32
  }
  func.func @transform_8(%arg0: i32) -> (i32, i32) {
    %c0_i32 = arith.constant 0 : i32
    %c0_i32_0 = arith.constant 0 : i32
    %c0_i32_1 = arith.constant 0 : i32
    return %c0_i32, %c0_i32_0 : i32, i32
  }
  func.func @transform_9(%arg0: i32) -> (i32, i32) {
    %c0_i32 = arith.constant 0 : i32
    %c0_i32_0 = arith.constant 0 : i32
    %c0_i32_1 = arith.constant 0 : i32
    return %c0_i32, %c0_i32_0 : i32, i32
  }
}

</mosaic_0001>

<llo_original>
// kernel: tpu_custom_call.1
$region0: #{tpu_custom_call.1}
  #allocation0 [shape = 'u32[]', space=smem, size = 0x4, offset = 0x4, fixed_abs, tag = 'smem constant byte address 0x4 - core index']
  #allocation1 [shape = 'u32[144,128]{1,0:T(1,128)}', space=vmem, size = 0x12000, scoped, tag = 'internal scratch']
  #allocation2 [shape = 'f32[16,8]{1,0:T(8,128)}', space=vmem, size = 0x2000, scoped, tag = 'scratch operand']
  %s0 = inlined_call_operand.hbm [shape: bf16[16,8,256], index: 0, kind: input, shape index: {}]
  %s1 = inlined_call_operand.vmem [shape: s32[1,16], index: 1, kind: input, shape index: {}]
  %s2 = inlined_call_operand.vmem [shape: bf16[8,128], index: 2, kind: input, shape index: {}]
  %s3 = inlined_call_operand.vmem [shape: f32[1,128], index: 3, kind: input, shape index: {}]
  %s4 = inlined_call_operand.hbm [shape: bf16[128,128], index: 4, kind: input, shape index: {}]
  %s5 = inlined_call_operand.hbm [shape: bf16[128,256], index: 5, kind: input, shape index: {}]
  %s6 = inlined_call_operand.hbm [shape: bf16[256,128], index: 6, kind: input, shape index: {}]
  %s7 = inlined_call_operand.vmem [shape: f32[1,128], index: 7, kind: input, shape index: {}]
  %s8 = inlined_call_operand.hbm [shape: f32[16,128], index: 8, kind: output, shape index: {0}]
  %s9 = inlined_call_operand.hbm [shape: f32[16,256], index: 9, kind: output, shape index: {1}]
  %10 = xla_tuple %s8, %s9
  %s11 = sld [smem:[#allocation0]]
  $region97: #{tpu_custom_call.1} parent=0
    _
  %s13 = ssub.s32 1, %s11
  %s14 = scalar_select 0, %s13, %s11
  $region1: #{tpu_custom_call.1} parent=0
    #allocation3 [shape = 'u8[65536]{0}', space=vmem, size = 0x10000, scoped, tag = 'input window, operand 0']
    #allocation4 [shape = 's32[2]{0}', space=sflag, size = 0x8, scoped, tag = 'scoped memory for tpu_custom_call.1']
    #allocation5 [shape = 's32[2]{0}', space=sflag, size = 0x8, scoped, tag = 'scoped memory for tpu_custom_call.1']
    #allocation6 [shape = 'u8[32768]{0}', space=vmem, size = 0x8000, scoped, tag = 'input window, operand 4, single buffered']
    #allocation7 [shape = 's32[1]{0}', space=sflag, size = 0x4, scoped, tag = 'scoped memory for tpu_custom_call.1']
    #allocation8 [shape = 'u8[65536]{0}', space=vmem, size = 0x10000, scoped, tag = 'input window, operand 5, single buffered']
    #allocation9 [shape = 'u8[65536]{0}', space=vmem, size = 0x10000, scoped, tag = 'input window, operand 6, single buffered']
    #allocation10 [shape = 's32[1]{0}', space=sflag, size = 0x4, scoped, tag = 'scoped memory for tpu_custom_call.1']
    #allocation11 [shape = 'u8[8192]{0}', space=vmem, size = 0x2000, scoped, tag = 'output window, operand 0, single buffered']
    #allocation12 [shape = 'u8[16384]{0}', space=vmem, size = 0x4000, scoped, tag = 'output window, operand 1, single buffered']
    #allocation13 [shape = 's32[1]{0}', space=sflag, size = 0x4, scoped, tag = 'scoped memory for tpu_custom_call.1']
    %15 = vsyncpa [#allocation4], 0
    %s16 = scalar_lea.sflag [#allocation4], 1
    %17 = vsyncpa %s16, 0
    %18 = vsyncpa [#allocation7], 0
    %19 = vsyncpa [#allocation10], 0
    %20 = vsyncpa [#allocation5], 0
    %21 = vsyncpa [#allocation13], 0
    loop: start=0, step=1, limit=4
    $region2: #{tpu_custom_call.1} parent=1 // loop_pre_header
      _
    $region3: #{tpu_custom_call.1} parent=1 // loop_header
      %s23 = sphi 0, %s27
      %p24 = scmp.ge.s32.totalorder %s23, 4
      %s33 = sphi 0, %s35
      %s36 = sphi 0, %s33
      %s37 = sphi 0, %s36
      %s53 = sphi 0, %s37
      %s57 = sphi 0, %s57
      %s59 = sphi 0, %s57
      %s60 = sphi 0, %s59
      %s74 = sphi 0, %s60
      %s78 = sphi 0, %s78
      %s80 = sphi 0, %s78
      %s81 = sphi 0, %s80
      %s95 = sphi 0, %s81
      %s99 = sphi 0, %s99
      %s101 = sphi 0, %s99
      %s102 = sphi 0, %s101
      %s116 = sphi 0, %s102
      %s120 = sphi 0, %s120
      %s122 = sphi 0, %s120
      %s123 = sphi 0, %s122
      %s137 = sphi 0, %s123
      %s141 = sphi 0, %s141
      %s143 = sphi 0, %s141
      %s144 = sphi 0, %s143
      %s158 = sphi 0, %s144
      %s162 = sphi 0, %s162
      %s164 = sphi 0, %s162
      %s165 = sphi 0, %s164
      %s179 = sphi 0, %s165
      %s183 = sphi 0, %s183
      %s185 = sphi 0, %s183
      %s186 = sphi 0, %s185
      %s200 = sphi 0, %s186
      %s204 = sphi 0, %s204
      %s206 = sphi 0, %s204
      %s207 = sphi 0, %s206
      %s221 = sphi 0, %s207
      %s225 = sphi 0, %s225
      %s227 = sphi 0, %s225
      %s228 = sphi 0, %s227
      %s242 = sphi 0, %s228
    $region4: #{tpu_custom_call.1} parent=1 // loop_header_branch
      %26 = sbr.rel (%p24) target = $region8
    $region5: #{tpu_custom_call.1} parent=1 // loop_body
      %s28 = ssub.s32 %s23, 1
      %s29 = ssub.s32 %s23, 2
      %s30 = sadd.s32 %s23, 1
      %s31 = ssub.s32 %s23, %s30
      %p32 = scmp.eq.s32.totalorder %s31, 0
      %s34 = sadd.s32 %s33, 1
      %s35 = scalar_select %p32, %s33, %s34
      %p38 = pneg %p32
      %p39 = scmp.eq.s32.totalorder %s23, 1
      %p40 = por %p38, %p39
      %p41 = scmp.ne.s32.totalorder %s33, %s36
      %p42 = scmp.eq.s32.totalorder %s23, 0
      %p43 = por %p41, %p42
      %p44 = scmp.ne.s32.totalorder %s33, %s36
      %p45 = scmp.eq.s32.totalorder %s28, 1
      %p46 = por %p44, %p45
      %p47 = scmp.ne.s32.totalorder %s36, %s37
      %p48 = scmp.eq.s32.totalorder %s28, 0
      %p49 = por %p47, %p48
      %p50 = scmp.ne.s32.totalorder %s36, %s37
      %p51 = scmp.eq.s32.totalorder %s29, 1
      %p52 = por %p50, %p51
      %p54 = scmp.ne.s32.totalorder %s37, %s53
      %p55 = scmp.eq.s32.totalorder %s29, 0
      %p56 = por %p54, %p55
      %s58 = sadd.s32 %s57, 1
      %p61 = scmp.eq.s32.totalorder %s23, 1
      %p62 = scmp.ne.s32.totalorder %s57, %s59
      %p63 = scmp.eq.s32.totalorder %s23, 0
      %p64 = por %p62, %p63
      %p65 = scmp.ne.s32.totalorder %s57, %s59
      %p66 = scmp.eq.s32.totalorder %s28, 1
      %p67 = por %p65, %p66
      %p68 = scmp.ne.s32.totalorder %s59, %s60
      %p69 = scmp.eq.s32.totalorder %s28, 0
      %p70 = por %p68, %p69
      %p71 = scmp.ne.s32.totalorder %s59, %s60
      %p72 = scmp.eq.s32.totalorder %s29, 1
      %p73 = por %p71, %p72
      %p75 = scmp.ne.s32.totalorder %s60, %s74
      %p76 = scmp.eq.s32.totalorder %s29, 0
      %p77 = por %p75, %p76
      %s79 = sadd.s32 %s78, 1
      %p82 = scmp.eq.s32.totalorder %s23, 1
      %p83 = scmp.ne.s32.totalorder %s78, %s80
      %p84 = scmp.eq.s32.totalorder %s23, 0
      %p85 = por %p83, %p84
      %p86 = scmp.ne.s32.totalorder %s78, %s80
      %p87 = scmp.eq.s32.totalorder %s28, 1
      %p88 = por %p86, %p87
      %p89 = scmp.ne.s32.totalorder %s80, %s81
      %p90 = scmp.eq.s32.totalorder %s28, 0
      %p91 = por %p89, %p90
      %p92 = scmp.ne.s32.totalorder %s80, %s81
      %p93 = scmp.eq.s32.totalorder %s29, 1
      %p94 = por %p92, %p93
      %p96 = scmp.ne.s32.totalorder %s81, %s95
      %p97 = scmp.eq.s32.totalorder %s29, 0
      %p98 = por %p96, %p97
      %s100 = sadd.s32 %s99, 1
      %p103 = scmp.eq.s32.totalorder %s23, 1
      %p104 = scmp.ne.s32.totalorder %s99, %s101
      %p105 = scmp.eq.s32.totalorder %s23, 0
      %p106 = por %p104, %p105
      %p107 = scmp.ne.s32.totalorder %s99, %s101
      %p108 = scmp.eq.s32.totalorder %s28, 1
      %p109 = por %p107, %p108
      %p110 = scmp.ne.s32.totalorder %s101, %s102
      %p111 = scmp.eq.s32.totalorder %s28, 0
      %p112 = por %p110, %p111
      %p113 = scmp.ne.s32.totalorder %s101, %s102
      %p114 = scmp.eq.s32.totalorder %s29, 1
      %p115 = por %p113, %p114
      %p117 = scmp.ne.s32.totalorder %s102, %s116
      %p118 = scmp.eq.s32.totalorder %s29, 0
      %p119 = por %p117, %p118
      %s121 = sadd.s32 %s120, 1
      %p124 = scmp.eq.s32.totalorder %s23, 1
      %p125 = scmp.ne.s32.totalorder %s120, %s122
      %p126 = scmp.eq.s32.totalorder %s23, 0
      %p127 = por %p125, %p126
      %p128 = scmp.ne.s32.totalorder %s120, %s122
      %p129 = scmp.eq.s32.totalorder %s28, 1
      %p130 = por %p128, %p129
      %p131 = scmp.ne.s32.totalorder %s122, %s123
      %p132 = scmp.eq.s32.totalorder %s28, 0
      %p133 = por %p131, %p132
      %p134 = scmp.ne.s32.totalorder %s122, %s123
      %p135 = scmp.eq.s32.totalorder %s29, 1
      %p136 = por %p134, %p135
      %p138 = scmp.ne.s32.totalorder %s123, %s137
      %p139 = scmp.eq.s32.totalorder %s29, 0
      %p140 = por %p138, %p139
      %s142 = sadd.s32 %s141, 1
      %p145 = scmp.eq.s32.totalorder %s23, 1
      %p146 = scmp.ne.s32.totalorder %s141, %s143
      %p147 = scmp.eq.s32.totalorder %s23, 0
      %p148 = por %p146, %p147
      %p149 = scmp.ne.s32.totalorder %s141, %s143
      %p150 = scmp.eq.s32.totalorder %s28, 1
      %p151 = por %p149, %p150
      %p152 = scmp.ne.s32.totalorder %s143, %s144
      %p153 = scmp.eq.s32.totalorder %s28, 0
      %p154 = por %p152, %p153
      %p155 = scmp.ne.s32.totalorder %s143, %s144
      %p156 = scmp.eq.s32.totalorder %s29, 1
      %p157 = por %p155, %p156
      %p159 = scmp.ne.s32.totalorder %s144, %s158
      %p160 = scmp.eq.s32.totalorder %s29, 0
      %p161 = por %p159, %p160
      %s163 = sadd.s32 %s162, 1
      %p166 = scmp.eq.s32.totalorder %s23, 1
      %p167 = scmp.ne.s32.totalorder %s162, %s164
      %p168 = scmp.eq.s32.totalorder %s23, 0
      %p169 = por %p167, %p168
      %p170 = scmp.ne.s32.totalorder %s162, %s164
      %p171 = scmp.eq.s32.totalorder %s28, 1
      %p172 = por %p170, %p171
      %p173 = scmp.ne.s32.totalorder %s164, %s165
      %p174 = scmp.eq.s32.totalorder %s28, 0
      %p175 = por %p173, %p174
      %p176 = scmp.ne.s32.totalorder %s164, %s165
      %p177 = scmp.eq.s32.totalorder %s29, 1
      %p178 = por %p176, %p177
      %p180 = scmp.ne.s32.totalorder %s165, %s179
      %p181 = scmp.eq.s32.totalorder %s29, 0
      %p182 = por %p180, %p181
      %s184 = sadd.s32 %s183, 1
      %p187 = scmp.eq.s32.totalorder %s23, 1
      %p188 = scmp.ne.s32.totalorder %s183, %s185
      %p189 = scmp.eq.s32.totalorder %s23, 0
      %p190 = por %p188, %p189
      %p191 = scmp.ne.s32.totalorder %s183, %s185
      %p192 = scmp.eq.s32.totalorder %s28, 1
      %p193 = por %p191, %p192
      %p194 = scmp.ne.s32.totalorder %s185, %s186
      %p195 = scmp.eq.s32.totalorder %s28, 0
      %p196 = por %p194, %p195
      %p197 = scmp.ne.s32.totalorder %s185, %s186
      %p198 = scmp.eq.s32.totalorder %s29, 1
      %p199 = por %p197, %p198
      %p201 = scmp.ne.s32.totalorder %s186, %s200
      %p202 = scmp.eq.s32.totalorder %s29, 0
      %p203 = por %p201, %p202
      %s205 = sadd.s32 %s204, 1
      %p208 = scmp.eq.s32.totalorder %s23, 1
      %p209 = scmp.ne.s32.totalorder %s204, %s206
      %p210 = scmp.eq.s32.totalorder %s23, 0
      %p211 = por %p209, %p210
      %p212 = scmp.ne.s32.totalorder %s204, %s206
      %p213 = scmp.eq.s32.totalorder %s28, 1
      %p214 = por %p212, %p213
      %p215 = scmp.ne.s32.totalorder %s206, %s207
      %p216 = scmp.eq.s32.totalorder %s28, 0
      %p217 = por %p215, %p216
      %p218 = scmp.ne.s32.totalorder %s206, %s207
      %p219 = scmp.eq.s32.totalorder %s29, 1
      %p220 = por %p218, %p219
      %p222 = scmp.ne.s32.totalorder %s207, %s221
      %p223 = scmp.eq.s32.totalorder %s29, 0
      %p224 = por %p222, %p223
      %s226 = sadd.s32 %s225, 1
      %p229 = scmp.eq.s32.totalorder %s23, 1
      %p230 = scmp.ne.s32.totalorder %s225, %s227
      %p231 = scmp.eq.s32.totalorder %s23, 0
      %p232 = por %p230, %p231
      %p233 = scmp.ne.s32.totalorder %s225, %s227
      %p234 = scmp.eq.s32.totalorder %s28, 1
      %p235 = por %p233, %p234
      %p236 = scmp.ne.s32.totalorder %s227, %s228
      %p237 = scmp.eq.s32.totalorder %s28, 0
      %p238 = por %p236, %p237
      %p239 = scmp.ne.s32.totalorder %s227, %s228
      %p240 = scmp.eq.s32.totalorder %s29, 1
      %p241 = por %p239, %p240
      %p243 = scmp.ne.s32.totalorder %s228, %s242
      %p244 = scmp.eq.s32.totalorder %s29, 0
      %p245 = por %p243, %p244
      %p246 = scmp.le.s32.totalorder 1, %s23
      %p247 = scmp.lt.s32.totalorder %s23, 3
      %p248 = pnand %p246, %p247
      %p249 = pneg %p248
      // Predicated region
      $region9: #{tpu_custom_call.1} parent=5 // pred_check
        _
      $region10: #{tpu_custom_call.1} parent=5 // pred_check_branch
        %251 = sbr.rel (%p248) target = $region12
      $region11: #{tpu_custom_call.1} parent=5 // pred_region
        %s252 = ssub.s32 %s23, 1
        // Predicated region
        $region13: #{tpu_custom_call.1} parent=11 // pred_check
          %p253 = pneg %p70
        $region14: #{tpu_custom_call.1} parent=11 // pred_check_branch
          %255 = sbr.rel (%p253) target = $region16
        $region15: #{tpu_custom_call.1} parent=11 // pred_region
          _
        $region16: #{tpu_custom_call.1} parent=11 // pred_fallthru
          _
        // Predicated region
        $region17: #{tpu_custom_call.1} parent=11 // pred_check
          %p256 = pneg %p91
        $region18: #{tpu_custom_call.1} parent=11 // pred_check_branch
          %258 = sbr.rel (%p256) target = $region20
        $region19: #{tpu_custom_call.1} parent=11 // pred_region
          _
        $region20: #{tpu_custom_call.1} parent=11 // pred_fallthru
          _
        // Predicated region
        $region21: #{tpu_custom_call.1} parent=11 // pred_check
          %p259 = pneg %p112
        $region22: #{tpu_custom_call.1} parent=11 // pred_check_branch
          %261 = sbr.rel (%p259) target = $region24
        $region23: #{tpu_custom_call.1} parent=11 // pred_region
          _
        $region24: #{tpu_custom_call.1} parent=11 // pred_fallthru
          _
        // Predicated region
        $region25: #{tpu_custom_call.1} parent=11 // pred_check
          %p262 = pneg %p133
        $region26: #{tpu_custom_call.1} parent=11 // pred_check_branch
          %264 = sbr.rel (%p262) target = $region28
        $region27: #{tpu_custom_call.1} parent=11 // pred_region
          %s266 = ssub.s32 1024, 1024
          %267 = vsyncadd [#allocation7], %s266
          %s268 = sshll.u32 [#allocation6], 4
          %s269 = int_to_ptr.vmem [resolvable:$true] %s268
          %274 = dma.hbm_to_vmem [thread:$0]  %s4, 1024, %s269, [#allocation7], 64, 64, 4
        $region28: #{tpu_custom_call.1} parent=11 // pred_fallthru
          _
        // Predicated region
        $region29: #{tpu_custom_call.1} parent=11 // pred_check
          %p275 = pneg %p154
        $region30: #{tpu_custom_call.1} parent=11 // pred_check_branch
          %277 = sbr.rel (%p275) target = $region32
        $region31: #{tpu_custom_call.1} parent=11 // pred_region
          %s279 = ssub.s32 2048, 2048
          %280 = vsyncadd [#allocation7], %s279
          %s281 = sshll.u32 [#allocation8], 4
          %s282 = int_to_ptr.vmem [resolvable:$true] %s281
          %287 = dma.hbm_to_vmem [thread:$0]  %s5, 2048, %s282, [#allocation7], 128, 128, 8
        $region32: #{tpu_custom_call.1} parent=11 // pred_fallthru
          _
        // Predicated region
        $region33: #{tpu_custom_call.1} parent=11 // pred_check
          %p288 = pneg %p175
        $region34: #{tpu_custom_call.1} parent=11 // pred_check_branch
          %290 = sbr.rel (%p288) target = $region36
        $region35: #{tpu_custom_call.1} parent=11 // pred_region
          %s292 = ssub.s32 2048, 2048
          %293 = vsyncadd [#allocation10], %s292
          %s294 = sshll.u32 [#allocation9], 4
          %s295 = int_to_ptr.vmem [resolvable:$true] %s294
          %300 = dma.hbm_to_vmem [thread:$0]  %s6, 2048, %s295, [#allocation10], 64, 64, 4
        $region36: #{tpu_custom_call.1} parent=11 // pred_fallthru
          _
        // Predicated region
        $region37: #{tpu_custom_call.1} parent=11 // pred_check
          %p301 = pneg %p196
        $region38: #{tpu_custom_call.1} parent=11 // pred_check_branch
          %303 = sbr.rel (%p301) target = $region40
        $region39: #{tpu_custom_call.1} parent=11 // pred_region
          _
        $region40: #{tpu_custom_call.1} parent=11 // pred_fallthru
          _
      $region12: #{tpu_custom_call.1} parent=5 // pred_fallthru
        _
      %p304 = scmp.lt.s32.totalorder %s23, 2
      // Predicated region
      $region41: #{tpu_custom_call.1} parent=5 // pred_check
        %p305 = pneg %p304
      $region42: #{tpu_custom_call.1} parent=5 // pred_check_branch
        %307 = sbr.rel (%p305) target = $region44
      $region43: #{tpu_custom_call.1} parent=5 // pred_region
        // Predicated region
        $region45: #{tpu_custom_call.1} parent=43 // pred_check
          %p308 = pneg %p43
        $region46: #{tpu_custom_call.1} parent=43 // pred_check_branch
          %310 = sbr.rel (%p308) target = $region48
        $region47: #{tpu_custom_call.1} parent=43 // pred_region
          %s311 = sand.u32 %s33, 1
          %s312 = scalar_lea.sflag [#allocation4], %s311
          %s313 = sand.u32 %s33, 1
          %s314 = smul.addr %s313, 64
          %s315 = scalar_lea.vmem [#allocation3], %s314
          %s317 = ssub.s32 1024, 1024
          %318 = vsyncadd %s312, %s317
          %s319 = smul.addr %s23, 64
          %s320 = scalar_lea.hbm %s0, %s319
          %s321 = sshll.u32 %s315, 4
          %s322 = int_to_ptr.vmem [resolvable:$true] %s321
          %327 = dma.hbm_to_vmem [thread:$0]  %s320, 1024, %s322, %s312, 128, 64, 4
        $region48: #{tpu_custom_call.1} parent=43 // pred_fallthru
          _
      $region44: #{tpu_custom_call.1} parent=5 // pred_fallthru
        _
      %p328 = scmp.le.s32.totalorder 1, %s23
      %p329 = scmp.lt.s32.totalorder %s23, 3
      %p330 = pnand %p328, %p329
      %p331 = pneg %p330
      // Predicated region
      $region49: #{tpu_custom_call.1} parent=5 // pred_check
        _
      $region50: #{tpu_custom_call.1} parent=5 // pred_check_branch
        %333 = sbr.rel (%p330) target = $region52
      $region51: #{tpu_custom_call.1} parent=5 // pred_region
        %s334 = ssub.s32 %s23, 1
        %s335 = sand.u32 %s36, 1
        %s336 = scalar_lea.sflag [#allocation4], %s335
        %s337 = sand.u32 %s36, 1
        %s338 = smul.addr %s337, 64
        %s339 = scalar_lea.vmem [#allocation3], %s338
        // Predicated region
        $region53: #{tpu_custom_call.1} parent=51 // pred_check
          %p340 = pneg %p49
        $region54: #{tpu_custom_call.1} parent=51 // pred_check_branch
          %342 = sbr.rel (%p340) target = $region56
        $region55: #{tpu_custom_call.1} parent=51 // pred_region
          %343 = dma.done %s336, 1024
        $region56: #{tpu_custom_call.1} parent=51 // pred_fallthru
          _
        // Predicated region
        $region57: #{tpu_custom_call.1} parent=51 // pred_check
          %p344 = pneg %p133
        $region58: #{tpu_custom_call.1} parent=51 // pred_check_branch
          %346 = sbr.rel (%p344) target = $region60
        $region59: #{tpu_custom_call.1} parent=51 // pred_region
          %347 = dma.done [#allocation7], 1024
        $region60: #{tpu_custom_call.1} parent=51 // pred_fallthru
          _
        // Predicated region
        $region61: #{tpu_custom_call.1} parent=51 // pred_check
          %p348 = pneg %p154
        $region62: #{tpu_custom_call.1} parent=51 // pred_check_branch
          %350 = sbr.rel (%p348) target = $region64
        $region63: #{tpu_custom_call.1} parent=51 // pred_region
          %351 = dma.done [#allocation7], 2048
        $region64: #{tpu_custom_call.1} parent=51 // pred_fallthru
          _
        // Predicated region
        $region65: #{tpu_custom_call.1} parent=51 // pred_check
          %p352 = pneg %p175
        $region66: #{tpu_custom_call.1} parent=51 // pred_check_branch
          %354 = sbr.rel (%p352) target = $region68
        $region67: #{tpu_custom_call.1} parent=51 // pred_region
          %355 = dma.done [#allocation10], 2048
        $region68: #{tpu_custom_call.1} parent=51 // pred_fallthru
          _
        %s356 = sand.u32 %s36, 1
        %s357 = scalar_lea.sflag [#allocation4], %s356
        %s358 = sand.u32 %s36, 1
        %s359 = smul.addr %s358, 64
        %s360 = scalar_lea.vmem [#allocation3], %s359
        %p361 = pneg %p49
        %p362 = pneg %p46
        %p363 = pneg %p70
        %p364 = pneg %p67
        %p365 = pneg %p91
        %p366 = pneg %p88
        %p367 = pneg %p112
        %p368 = pneg %p109
        %p369 = pneg %p133
        %p370 = pneg %p130
        %p371 = pneg %p154
        %p372 = pneg %p151
        %p373 = pneg %p175
        %p374 = pneg %p172
        %p375 = pneg %p196
        %p376 = pneg %p193
        %p377 = pneg %p217
        %p378 = pneg %p214
        %p379 = pneg %p238
        %p380 = pneg %p235
        %p382 = scmp.eq.s32.totalorder %s28, 0
        // Predicated region
        $region69: #{tpu_custom_call.1} parent=51 // pred_check
          %p383 = pneg %p382
        $region70: #{tpu_custom_call.1} parent=51 // pred_check_branch
          %385 = sbr.rel (%p383) target = $region72
        $region71: #{tpu_custom_call.1} parent=51 // pred_region
          %vm386 = vcmask 64512
          %387 = vst.msk [vmem:[#allocation2] sm:$0xff] %vm386, 0.0
          %388 = vst.msk [vmem:[#allocation2 + $0x8] sm:$0xff] %vm386, 0.0
        $region72: #{tpu_custom_call.1} parent=51 // pred_fallthru
          _
        %v389 = vld [vmem:[#allocation2] sm:$0xff]
        %v390 = vld [vmem:[#allocation2 + $0x8] sm:$0xff]
        %v391 = vld [vmem:[%s339] sm:$0xf]
        %v392 = vld [vmem:[%s339 + $0x4] sm:$0xf]
        %v393 = vld [vmem:[%s339 + $0x8] sm:$0xf]
        %v394 = vld [vmem:[%s339 + $0xc] sm:$0xf]
        %v395 = vld [vmem:[%s339 + $0x10] sm:$0xf]
        %v396 = vld [vmem:[%s339 + $0x14] sm:$0xf]
        %v397 = vld [vmem:[%s339 + $0x18] sm:$0xf]
        %v398 = vld [vmem:[%s339 + $0x1c] sm:$0xf]
        %v399 = vld [vmem:[%s339 + $0x20] sm:$0xf]
        %v400 = vld [vmem:[%s339 + $0x24] sm:$0xf]
        %v401 = vld [vmem:[%s339 + $0x28] sm:$0xf]
        %v402 = vld [vmem:[%s339 + $0x2c] sm:$0xf]
        %v403 = vld [vmem:[%s339 + $0x30] sm:$0xf]
        %v404 = vld [vmem:[%s339 + $0x34] sm:$0xf]
        %v405 = vld [vmem:[%s339 + $0x38] sm:$0xf]
        %v406 = vld [vmem:[%s339 + $0x3c] sm:$0xf]
        %v407 = vunpack.c.l.bf16 %v391
        %v408 = vunpack.c.l.bf16 %v392
        %v409 = vunpack.c.l.bf16 %v393
        %v410 = vunpack.c.l.bf16 %v394
        %v411 = vunpack.c.l.bf16 %v395
        %v412 = vunpack.c.l.bf16 %v396
        %v413 = vunpack.c.l.bf16 %v397
        %v414 = vunpack.c.l.bf16 %v398
        %v415 = vunpack.c.l.bf16 %v399
        %v416 = vunpack.c.l.bf16 %v400
        %v417 = vunpack.c.l.bf16 %v401
        %v418 = vunpack.c.l.bf16 %v402
        %v419 = vunpack.c.l.bf16 %v403
        %v420 = vunpack.c.l.bf16 %v404
        %v421 = vunpack.c.l.bf16 %v405
        %v422 = vunpack.c.l.bf16 %v406
        %423 = vadd.xlane.f32.xlu0 %v407
        %v424 = vpop.xlane.xlu0 %423
        %425 = vadd.xlane.f32.xlu0 %v408
        %v426 = vpop.xlane.xlu0 %425
        %427 = vadd.xlane.f32.xlu0 %v409
        %v428 = vpop.xlane.xlu0 %427
        %429 = vadd.xlane.f32.xlu0 %v410
        %v430 = vpop.xlane.xlu0 %429
        %431 = vadd.xlane.f32.xlu0 %v411
        %v432 = vpop.xlane.xlu0 %431
        %433 = vadd.xlane.f32.xlu0 %v412
        %v434 = vpop.xlane.xlu0 %433
        %435 = vadd.xlane.f32.xlu0 %v413
        %v436 = vpop.xlane.xlu0 %435
        %437 = vadd.xlane.f32.xlu0 %v414
        %v438 = vpop.xlane.xlu0 %437
        %439 = vadd.xlane.f32.xlu0 %v415
        %v440 = vpop.xlane.xlu0 %439
        %441 = vadd.xlane.f32.xlu0 %v416
        %v442 = vpop.xlane.xlu0 %441
        %443 = vadd.xlane.f32.xlu0 %v417
        %v444 = vpop.xlane.xlu0 %443
        %445 = vadd.xlane.f32.xlu0 %v418
        %v446 = vpop.xlane.xlu0 %445
        %447 = vadd.xlane.f32.xlu0 %v419
        %v448 = vpop.xlane.xlu0 %447
        %449 = vadd.xlane.f32.xlu0 %v420
        %v450 = vpop.xlane.xlu0 %449
        %451 = vadd.xlane.f32.xlu0 %v421
        %v452 = vpop.xlane.xlu0 %451
        %453 = vadd.xlane.f32.xlu0 %v422
        %v454 = vpop.xlane.xlu0 %453
        %v471 = vlaneseq
        %v472 = vand.u32 %v471, 127
        %v473 = vlaneseq
        %v474 = vshrl.u32 %v473, 7
        %v475 = vsub.s32 %v472, %v474
        %v476 = vrot.slane %v424, %v475
        %v477 = vlaneseq
        %v478 = vshrl.u32 %v477, 7
        %v479 = vsub.s32 %v472, %v478
        %v480 = vrot.slane %v426, %v479
        %v481 = vlaneseq
        %v482 = vshrl.u32 %v481, 7
        %v483 = vsub.s32 %v472, %v482
        %v484 = vrot.slane %v428, %v483
        %v485 = vlaneseq
        %v486 = vshrl.u32 %v485, 7
        %v487 = vsub.s32 %v472, %v486
        %v488 = vrot.slane %v430, %v487
        %v489 = vlaneseq
        %v490 = vshrl.u32 %v489, 7
        %v491 = vsub.s32 %v472, %v490
        %v492 = vrot.slane %v432, %v491
        %v493 = vlaneseq
        %v494 = vshrl.u32 %v493, 7
        %v495 = vsub.s32 %v472, %v494
        %v496 = vrot.slane %v434, %v495
        %v497 = vlaneseq
        %v498 = vshrl.u32 %v497, 7
        %v499 = vsub.s32 %v472, %v498
        %v500 = vrot.slane %v436, %v499
        %v501 = vlaneseq
        %v502 = vshrl.u32 %v501, 7
        %v503 = vsub.s32 %v472, %v502
        %v504 = vrot.slane %v438, %v503
        %v505 = vlaneseq
        %v506 = vshrl.u32 %v505, 7
        %v507 = vsub.s32 %v472, %v506
        %v508 = vrot.slane %v440, %v507
        %v509 = vlaneseq
        %v510 = vshrl.u32 %v509, 7
        %v511 = vsub.s32 %v472, %v510
        %v512 = vrot.slane %v442, %v511
        %v513 = vlaneseq
        %v514 = vshrl.u32 %v513, 7
        %v515 = vsub.s32 %v472, %v514
        %v516 = vrot.slane %v444, %v515
        %v517 = vlaneseq
        %v518 = vshrl.u32 %v517, 7
        %v519 = vsub.s32 %v472, %v518
        %v520 = vrot.slane %v446, %v519
        %v521 = vlaneseq
        %v522 = vshrl.u32 %v521, 7
        %v523 = vsub.s32 %v472, %v522
        %v524 = vrot.slane %v448, %v523
        %v525 = vlaneseq
        %v526 = vshrl.u32 %v525, 7
        %v527 = vsub.s32 %v472, %v526
        %v528 = vrot.slane %v450, %v527
        %v529 = vlaneseq
        %v530 = vshrl.u32 %v529, 7
        %v531 = vsub.s32 %v472, %v530
        %v532 = vrot.slane %v452, %v531
        %v533 = vlaneseq
        %v534 = vshrl.u32 %v533, 7
        %v535 = vsub.s32 %v472, %v534
        %v536 = vrot.slane %v454, %v535
        %vm537 = vcmask 1041409
        %v538 = vsel %vm537, %v480, %v476
        %vm539 = vcmask 1042434
        %v540 = vsel %vm539, %v484, %v538
        %vm541 = vcmask 1043459
        %v542 = vsel %vm541, %v488, %v540
        %vm543 = vcmask 1044484
        %v544 = vsel %vm543, %v492, %v542
        %vm545 = vcmask 1045509
        %v546 = vsel %vm545, %v496, %v544
        %vm547 = vcmask 1046534
        %v548 = vsel %vm547, %v500, %v546
        %vm549 = vcmask 1047559
        %v550 = vsel %vm549, %v504, %v548
        %v551 = vsel %vm537, %v512, %v508
        %v552 = vsel %vm539, %v516, %v551
        %v553 = vsel %vm541, %v520, %v552
        %v554 = vsel %vm543, %v524, %v553
        %v555 = vsel %vm545, %v528, %v554
        %v556 = vsel %vm547, %v532, %v555
        %v557 = vsel %vm549, %v536, %v556
        %v560 = vadd.f32 %v389, %v550
        %v561 = vadd.f32 %v390, %v557
        %vm562 = vcmask 64512
        %563 = vst.msk [vmem:[#allocation2] sm:$0xff] %vm562, %v560
        %564 = vst.msk [vmem:[#allocation2 + $0x8] sm:$0xff] %vm562, %v561
        %p565 = scmp.eq.s32.totalorder %s28, 1
        // Predicated region
        $region73: #{tpu_custom_call.1} parent=51 // pred_check
          %p566 = pneg %p565
        $region74: #{tpu_custom_call.1} parent=51 // pred_check_branch
          %568 = sbr.rel (%p566) target = $region76
        $region75: #{tpu_custom_call.1} parent=51 // pred_region
          %v569 = vld [vmem:[#allocation2] sm:$0xff]
          %v570 = vld [vmem:[#allocation2 + $0x8] sm:$0xff]
          %v571 = vmul.f32 %v569, 0.00390625
          %v572 = vmul.f32 %v570, 0.00390625
          %v573 = vld [vmem:[%s2] sm:$0xf]
          %v574 = vpack.c.bf16 %v572, %v571
          %v575 = vld [vmem:[%s3] sm:$0x1]
          %v577 = vlaneseq
          %v578 = vshrl.u32 %v577, 7
          %v579 = vsub.s32 0, %v578
          %v580 = vrot.slane %v575, %v579
          %v583 = vsel %vm562, %v574, 0
          %vm585 = vcmask 1043456
          %v587 = vsel %vm585, %v573, 0
          %589 = vmatprep.subr.bf16.mxu0 0
          %590 = vmatpush1.bf16.msra.mxu0 %v587
          %591 = vmatprep.subr.bf16.mxu0 0
          %592 = vmatpush1.bf16.msra.mxu0 0
          %593 = vmatprep.subr.bf16.mxu0 0
          %594 = vmatpush1.bf16.msra.mxu0 0
          %595 = vmatprep.subr.bf16.mxu0 0
          %596 = vmatpush1.bf16.msra.mxu0 0
          %597 = vmatprep.subr.bf16.mxu0 0
          %598 = vmatpush1.bf16.msra.mxu0 0
          %599 = vmatprep.subr.bf16.mxu0 0
          %600 = vmatpush1.bf16.msra.mxu0 0
          %601 = vmatprep.subr.bf16.mxu0 0
          %602 = vmatpush1.bf16.msra.mxu0 0
          %603 = vmatprep.subr.bf16.mxu0 0
          %604 = vmatpush1.bf16.msra.mxu0 0
          %605 = vmatprep.subr.bf16.mxu0 0
          %606 = vmatpush1.bf16.msra.mxu0 0
          %607 = vmatprep.subr.bf16.mxu0 0
          %608 = vmatpush1.bf16.msra.mxu0 0
          %609 = vmatprep.subr.bf16.mxu0 0
          %610 = vmatpush1.bf16.msra.mxu0 0
          %611 = vmatprep.subr.bf16.mxu0 0
          %612 = vmatpush1.bf16.msra.mxu0 0
          %613 = vmatprep.subr.bf16.mxu0 0
          %614 = vmatpush1.bf16.msra.mxu0 0
          %615 = vmatprep.subr.bf16.mxu0 0
          %616 = vmatpush1.bf16.msra.mxu0 0
          %617 = vmatprep.subr.bf16.mxu0 0
          %618 = vmatpush1.bf16.msra.mxu0 0
          %619 = vmatprep.subr.bf16.mxu0 0
          %620 = vmatpush1.bf16.msra.mxu0 0
          %621 = vmatprep.mubr.bf16.mxu0 0
          %622 = vmatmul.mubr.bf16.gmra.mrb[0].mxu0 %v583
          %v623 = vpop.f32.mrb[0].mxu0
          %v624 = vadd.f32 %v580, %v623
          %v625 = vpop.f32.mrb[0].mxu0
          %v626 = vpop.f32.mrb[0].mxu0
          %v627 = vadd.f32 %v580, %v626
          %v628 = vpop.f32.mrb[0].mxu0
          %629 = vdwg.mxu0
          %v630 = vld [vmem:[%s1] sm:$0x1]
          %v631 = vlaneseq
          %v632 = vshrl.u32 %v631, 7
          %v633 = vadd.s32 %v632, 8
          %v634 = vadd.s32 %v632, 16
          %v635 = vadd.s32 %v632, 24
          %v636 = vadd.s32 %v632, 32
          %v637 = vadd.s32 %v632, 40
          %v638 = vadd.s32 %v632, 48
          %v639 = vadd.s32 %v632, 56
          %v640 = vadd.s32 %v632, 64
          %v641 = vadd.s32 %v632, 72
          %v642 = vadd.s32 %v632, 80
          %v643 = vadd.s32 %v632, 88
          %v644 = vadd.s32 %v632, 96
          %v645 = vadd.s32 %v632, 104
          %v646 = vadd.s32 %v632, 112
          %v647 = vadd.s32 %v632, 120
          %v648 = vlaneseq
          %v649 = vshrl.u32 %v648, 7
          %v650 = vsub.s32 0, %v649
          %v651 = vrot.slane %v630, %v650
          %vm652 = vcmp.eq.s32.totalorder %v632, %v651
          %vm653 = vcmp.eq.s32.totalorder %v633, %v651
          %vm654 = vcmp.eq.s32.totalorder %v634, %v651
          %vm655 = vcmp.eq.s32.totalorder %v635, %v651
          %vm656 = vcmp.eq.s32.totalorder %v636, %v651
          %vm657 = vcmp.eq.s32.totalorder %v637, %v651
          %vm658 = vcmp.eq.s32.totalorder %v638, %v651
          %vm659 = vcmp.eq.s32.totalorder %v639, %v651
          %vm660 = vcmp.eq.s32.totalorder %v640, %v651
          %vm661 = vcmp.eq.s32.totalorder %v641, %v651
          %vm662 = vcmp.eq.s32.totalorder %v642, %v651
          %vm663 = vcmp.eq.s32.totalorder %v643, %v651
          %vm664 = vcmp.eq.s32.totalorder %v644, %v651
          %vm665 = vcmp.eq.s32.totalorder %v645, %v651
          %vm666 = vcmp.eq.s32.totalorder %v646, %v651
          %vm667 = vcmp.eq.s32.totalorder %v647, %v651
          %v668 = vsel %vm652, 1, 0
          %v669 = vsel %vm653, 1, 0
          %v670 = vsel %vm654, 1, 0
          %v671 = vsel %vm655, 1, 0
          %v672 = vsel %vm656, 1, 0
          %v673 = vsel %vm657, 1, 0
          %v674 = vsel %vm658, 1, 0
          %v675 = vsel %vm659, 1, 0
          %v676 = vsel %vm660, 1, 0
          %v677 = vsel %vm661, 1, 0
          %v678 = vsel %vm662, 1, 0
          %v679 = vsel %vm663, 1, 0
          %v680 = vsel %vm664, 1, 0
          %v681 = vsel %vm665, 1, 0
          %v682 = vsel %vm666, 1, 0
          %v683 = vsel %vm667, 1, 0
          %v684 = vcvt.s32.f32 %v668
          %v685 = vcvt.s32.f32 %v669
          %v686 = vcvt.s32.f32 %v670
          %v687 = vcvt.s32.f32 %v671
          %v688 = vcvt.s32.f32 %v672
          %v689 = vcvt.s32.f32 %v673
          %v690 = vcvt.s32.f32 %v674
          %v691 = vcvt.s32.f32 %v675
          %v692 = vcvt.s32.f32 %v676
          %v693 = vcvt.s32.f32 %v677
          %v694 = vcvt.s32.f32 %v678
          %v695 = vcvt.s32.f32 %v679
          %v696 = vcvt.s32.f32 %v680
          %v697 = vcvt.s32.f32 %v681
          %v698 = vcvt.s32.f32 %v682
          %v699 = vcvt.s32.f32 %v683
          %v700 = vpack.c.bf16 %v685, %v684
          %v701 = vpack.c.bf16 %v687, %v686
          %v702 = vpack.c.bf16 %v689, %v688
          %v703 = vpack.c.bf16 %v691, %v690
          %v704 = vpack.c.bf16 %v693, %v692
          %v705 = vpack.c.bf16 %v695, %v694
          %v706 = vpack.c.bf16 %v697, %v696
          %v707 = vpack.c.bf16 %v699, %v698
          %v708 = vpack.c.bf16 %v627, %v624
          %vm709 = vcmask 130048
          %v711 = vsel %vm709, %v700, 0
          %v714 = vsel %vm709, %v701, 0
          %v717 = vsel %vm709, %v702, 0
          %v720 = vsel %vm709, %v703, 0
          %v723 = vsel %vm709, %v704, 0
          %v726 = vsel %vm709, %v705, 0
          %v729 = vsel %vm709, %v706, 0
          %v732 = vsel %vm709, %v707, 0
          %734 = vmatprep.subr.bf16.mxu0 0
          %735 = vmatpush1.bf16.msra.mxu0 %v708
          %736 = vmatprep.subr.bf16.mxu0 0
          %737 = vmatpush1.bf16.msra.mxu0 0
          %738 = vmatprep.subr.bf16.mxu0 0
          %739 = vmatpush1.bf16.msra.mxu0 0
          %740 = vmatprep.subr.bf16.mxu0 0
          %741 = vmatpush1.bf16.msra.mxu0 0
          %742 = vmatprep.subr.bf16.mxu0 0
          %743 = vmatpush1.bf16.msra.mxu0 0
          %744 = vmatprep.subr.bf16.mxu0 0
          %745 = vmatpush1.bf16.msra.mxu0 0
          %746 = vmatprep.subr.bf16.mxu0 0
          %747 = vmatpush1.bf16.msra.mxu0 0
          %748 = vmatprep.subr.bf16.mxu0 0
          %749 = vmatpush1.bf16.msra.mxu0 0
          %750 = vmatprep.subr.bf16.mxu0 0
          %751 = vmatpush1.bf16.msra.mxu0 0
          %752 = vmatprep.subr.bf16.mxu0 0
          %753 = vmatpush1.bf16.msra.mxu0 0
          %754 = vmatprep.subr.bf16.mxu0 0
          %755 = vmatpush1.bf16.msra.mxu0 0
          %756 = vmatprep.subr.bf16.mxu0 0
          %757 = vmatpush1.bf16.msra.mxu0 0
          %758 = vmatprep.subr.bf16.mxu0 0
          %759 = vmatpush1.bf16.msra.mxu0 0
          %760 = vmatprep.subr.bf16.mxu0 0
          %761 = vmatpush1.bf16.msra.mxu0 0
          %762 = vmatprep.subr.bf16.mxu0 0
          %763 = vmatpush1.bf16.msra.mxu0 0
          %764 = vmatprep.subr.bf16.mxu0 0
          %765 = vmatpush1.bf16.msra.mxu0 0
          %766 = vmatprep.mubr.bf16.mxu0 0
          %767 = vmatmul.mubr.bf16.gmra.mrb[0].mxu0 %v711
          %v768 = vpop.f32.mrb[0].mxu0
          %v769 = vadd.f32 0.0, %v768
          %v770 = vpop.f32.mrb[0].mxu0
          %v771 = vpop.f32.mrb[0].mxu0
          %v772 = vadd.f32 0.0, %v771
          %v773 = vpop.f32.mrb[0].mxu0
          %774 = vmatprep.mubr.bf16.mxu0 0
          %775 = vmatmul.mubr.bf16.gmra.mrb[0].mxu0 %v714
          %v776 = vpop.f32.mrb[0].mxu0
          %v777 = vadd.f32 0.0, %v776
          %v778 = vpop.f32.mrb[0].mxu0
          %v779 = vpop.f32.mrb[0].mxu0
          %v780 = vadd.f32 0.0, %v779
          %v781 = vpop.f32.mrb[0].mxu0
          %782 = vmatprep.mubr.bf16.mxu0 0
          %783 = vmatmul.mubr.bf16.gmra.mrb[0].mxu0 %v717
          %v784 = vpop.f32.mrb[0].mxu0
          %v785 = vadd.f32 0.0, %v784
          %v786 = vpop.f32.mrb[0].mxu0
          %v787 = vpop.f32.mrb[0].mxu0
          %v788 = vadd.f32 0.0, %v787
          %v789 = vpop.f32.mrb[0].mxu0
          %790 = vmatprep.mubr.bf16.mxu0 0
          %791 = vmatmul.mubr.bf16.gmra.mrb[0].mxu0 %v720
          %v792 = vpop.f32.mrb[0].mxu0
          %v793 = vadd.f32 0.0, %v792
          %v794 = vpop.f32.mrb[0].mxu0
          %v795 = vpop.f32.mrb[0].mxu0
          %v796 = vadd.f32 0.0, %v795
          %v797 = vpop.f32.mrb[0].mxu0
          %798 = vmatprep.mubr.bf16.mxu0 0
          %799 = vmatmul.mubr.bf16.gmra.mrb[0].mxu0 %v723
          %v800 = vpop.f32.mrb[0].mxu0
          %v801 = vadd.f32 0.0, %v800
          %v802 = vpop.f32.mrb[0].mxu0
          %v803 = vpop.f32.mrb[0].mxu0
          %v804 = vadd.f32 0.0, %v803
          %v805 = vpop.f32.mrb[0].mxu0
          %806 = vmatprep.mubr.bf16.mxu0 0
          %807 = vmatmul.mubr.bf16.gmra.mrb[0].mxu0 %v726
          %v808 = vpop.f32.mrb[0].mxu0
          %v809 = vadd.f32 0.0, %v808
          %v810 = vpop.f32.mrb[0].mxu0
          %v811 = vpop.f32.mrb[0].mxu0
          %v812 = vadd.f32 0.0, %v811
          %v813 = vpop.f32.mrb[0].mxu0
          %814 = vmatprep.mubr.bf16.mxu0 0
          %815 = vmatmul.mubr.bf16.gmra.mrb[0].mxu0 %v729
          %v816 = vpop.f32.mrb[0].mxu0
          %v817 = vadd.f32 0.0, %v816
          %v818 = vpop.f32.mrb[0].mxu0
          %v819 = vpop.f32.mrb[0].mxu0
          %v820 = vadd.f32 0.0, %v819
          %v821 = vpop.f32.mrb[0].mxu0
          %822 = vmatprep.mubr.bf16.mxu0 0
          %823 = vmatmul.mubr.bf16.gmra.mrb[0].mxu0 %v732
          %v824 = vpop.f32.mrb[0].mxu0
          %v825 = vadd.f32 0.0, %v824
          %v826 = vpop.f32.mrb[0].mxu0
          %v827 = vpop.f32.mrb[0].mxu0
          %v828 = vadd.f32 0.0, %v827
          %v829 = vpop.f32.mrb[0].mxu0
          %830 = vdwg.mxu0
          %v831 = vsel %vm709, %v684, 0.0
          %832 = vadd.xlane.f32.xlu0 %v831
          %v833 = vpop.xlane.xlu0 %832
          %v834 = vsel %vm709, %v685, 0.0
          %835 = vadd.xlane.f32.xlu0 %v834
          %v836 = vpop.xlane.xlu0 %835
          %v837 = vsel %vm709, %v686, 0.0
          %838 = vadd.xlane.f32.xlu0 %v837
          %v839 = vpop.xlane.xlu0 %838
          %v840 = vsel %vm709, %v687, 0.0
          %841 = vadd.xlane.f32.xlu0 %v840
          %v842 = vpop.xlane.xlu0 %841
          %v843 = vsel %vm709, %v688, 0.0
          %844 = vadd.xlane.f32.xlu0 %v843
          %v845 = vpop.xlane.xlu0 %844
          %v846 = vsel %vm709, %v689, 0.0
          %847 = vadd.xlane.f32.xlu0 %v846
          %v848 = vpop.xlane.xlu0 %847
          %v849 = vsel %vm709, %v690, 0.0
          %850 = vadd.xlane.f32.xlu0 %v849
          %v851 = vpop.xlane.xlu0 %850
          %v852 = vsel %vm709, %v691, 0.0
          %853 = vadd.xlane.f32.xlu0 %v852
          %v854 = vpop.xlane.xlu0 %853
          %v855 = vsel %vm709, %v692, 0.0
          %856 = vadd.xlane.f32.xlu0 %v855
          %v857 = vpop.xlane.xlu0 %856
          %v858 = vsel %vm709, %v693, 0.0
          %859 = vadd.xlane.f32.xlu0 %v858
          %v860 = vpop.xlane.xlu0 %859
          %v861 = vsel %vm709, %v694, 0.0
          %862 = vadd.xlane.f32.xlu0 %v861
          %v863 = vpop.xlane.xlu0 %862
          %v864 = vsel %vm709, %v695, 0.0
          %865 = vadd.xlane.f32.xlu0 %v864
          %v866 = vpop.xlane.xlu0 %865
          %v867 = vsel %vm709, %v696, 0.0
          %868 = vadd.xlane.f32.xlu0 %v867
          %v869 = vpop.xlane.xlu0 %868
          %v870 = vsel %vm709, %v697, 0.0
          %871 = vadd.xlane.f32.xlu0 %v870
          %v872 = vpop.xlane.xlu0 %871
          %v873 = vsel %vm709, %v698, 0.0
          %874 = vadd.xlane.f32.xlu0 %v873
          %v875 = vpop.xlane.xlu0 %874
          %v876 = vsel %vm709, %v699, 0.0
          %877 = vadd.xlane.f32.xlu0 %v876
          %v878 = vpop.xlane.xlu0 %877
          %v879 = vmax.f32 %v833, 1.0
          %v880 = vmax.f32 %v836, 1.0
          %v881 = vmax.f32 %v839, 1.0
          %v882 = vmax.f32 %v842, 1.0
          %v883 = vmax.f32 %v845, 1.0
          %v884 = vmax.f32 %v848, 1.0
          %v885 = vmax.f32 %v851, 1.0
          %v886 = vmax.f32 %v854, 1.0
          %v887 = vmax.f32 %v857, 1.0
          %v888 = vmax.f32 %v860, 1.0
          %v889 = vmax.f32 %v863, 1.0
          %v890 = vmax.f32 %v866, 1.0
          %v891 = vmax.f32 %v869, 1.0
          %v892 = vmax.f32 %v872, 1.0
          %v893 = vmax.f32 %v875, 1.0
          %v894 = vmax.f32 %v878, 1.0
          %v895 = vrcp.pop %v879
          %v896 = vmul.f32 1.0, %v895
          %v897 = vrcp.pop %v880
          %v898 = vmul.f32 1.0, %v897
          %v899 = vrcp.pop %v881
          %v900 = vmul.f32 1.0, %v899
          %v901 = vrcp.pop %v882
          %v902 = vmul.f32 1.0, %v901
          %v903 = vrcp.pop %v883
          %v904 = vmul.f32 1.0, %v903
          %v905 = vrcp.pop %v884
          %v906 = vmul.f32 1.0, %v905
          %v907 = vrcp.pop %v885
          %v908 = vmul.f32 1.0, %v907
          %v909 = vrcp.pop %v886
          %v910 = vmul.f32 1.0, %v909
          %v911 = vrcp.pop %v887
          %v912 = vmul.f32 1.0, %v911
          %v913 = vrcp.pop %v888
          %v914 = vmul.f32 1.0, %v913
          %v915 = vrcp.pop %v889
          %v916 = vmul.f32 1.0, %v915
          %v917 = vrcp.pop %v890
          %v918 = vmul.f32 1.0, %v917
          %v919 = vrcp.pop %v891
          %v920 = vmul.f32 1.0, %v919
          %v921 = vrcp.pop %v892
          %v922 = vmul.f32 1.0, %v921
          %v923 = vrcp.pop %v893
          %v924 = vmul.f32 1.0, %v923
          %v925 = vrcp.pop %v894
          %v926 = vmul.f32 1.0, %v925
          %v927 = vmul.f32 %v769, %v896
          %v928 = vmul.f32 %v772, %v898
          %v929 = vmul.f32 %v777, %v900
          %v930 = vmul.f32 %v780, %v902
          %v931 = vmul.f32 %v785, %v904
          %v932 = vmul.f32 %v788, %v906
          %v933 = vmul.f32 %v793, %v908
          %v934 = vmul.f32 %v796, %v910
          %v935 = vmul.f32 %v801, %v912
          %v936 = vmul.f32 %v804, %v914
          %v937 = vmul.f32 %v809, %v916
          %v938 = vmul.f32 %v812, %v918
          %v939 = vmul.f32 %v817, %v920
          %v940 = vmul.f32 %v820, %v922
          %v941 = vmul.f32 %v825, %v924
          %v942 = vmul.f32 %v828, %v926
          %v943 = vld [vmem:[#allocation6] sm:$0xf]
          %v944 = vld [vmem:[#allocation6 + $0x4] sm:$0xf]
          %v945 = vld [vmem:[#allocation6 + $0x8] sm:$0xf]
          %v946 = vld [vmem:[#allocation6 + $0xc] sm:$0xf]
          %v947 = vld [vmem:[#allocation6 + $0x10] sm:$0xf]
          %v948 = vld [vmem:[#allocation6 + $0x14] sm:$0xf]
          %v949 = vld [vmem:[#allocation6 + $0x18] sm:$0xf]
          %v950 = vld [vmem:[#allocation6 + $0x1c] sm:$0xf]
          %v951 = vld [vmem:[#allocation6 + $0x20] sm:$0xf]
          %v952 = vld [vmem:[#allocation6 + $0x24] sm:$0xf]
          %v953 = vld [vmem:[#allocation6 + $0x28] sm:$0xf]
          %v954 = vld [vmem:[#allocation6 + $0x2c] sm:$0xf]
          %v955 = vld [vmem:[#allocation6 + $0x30] sm:$0xf]
          %v956 = vld [vmem:[#allocation6 + $0x34] sm:$0xf]
          %v957 = vld [vmem:[#allocation6 + $0x38] sm:$0xf]
          %v958 = vld [vmem:[#allocation6 + $0x3c] sm:$0xf]
          %v975 = vunpack.c.l.b16 %v943
          %v976 = vunpack.c.l.b16 %v944
          %v977 = vunpack.c.l.b16 %v945
          %v978 = vunpack.c.l.b16 %v946
          %v979 = vunpack.c.l.b16 %v947
          %v980 = vunpack.c.l.b16 %v948
          %v981 = vunpack.c.l.b16 %v949
          %v982 = vunpack.c.l.b16 %v950
          %v983 = vunpack.c.l.b16 %v951
          %v984 = vunpack.c.l.b16 %v952
          %v985 = vunpack.c.l.b16 %v953
          %v986 = vunpack.c.l.b16 %v954
          %v987 = vunpack.c.l.b16 %v955
          %v988 = vunpack.c.l.b16 %v956
          %v989 = vunpack.c.l.b16 %v957
          %v990 = vunpack.c.l.b16 %v958
          %v991 = vpack.c.b16 %v976, %v975
          %v992 = vpack.c.b16 %v978, %v977
          %v993 = vpack.c.b16 %v980, %v979
          %v994 = vpack.c.b16 %v982, %v981
          %v995 = vpack.c.b16 %v984, %v983
          %v996 = vpack.c.b16 %v986, %v985
          %v997 = vpack.c.b16 %v988, %v987
          %v998 = vpack.c.b16 %v990, %v989
          %1007 = vmatprep.subr.bf16.mxu0 0
          %1008 = vmatpush1.bf16.msra.mxu0 %v991
          %1009 = vmatprep.subr.bf16.mxu0 0
          %1010 = vmatpush1.bf16.msra.mxu0 %v992
          %1011 = vmatprep.subr.bf16.mxu0 0
          %1012 = vmatpush1.bf16.msra.mxu0 %v993
          %1013 = vmatprep.subr.bf16.mxu0 0
          %1014 = vmatpush1.bf16.msra.mxu0 %v994
          %1015 = vmatprep.subr.bf16.mxu0 0
          %1016 = vmatpush1.bf16.msra.mxu0 %v995
          %1017 = vmatprep.subr.bf16.mxu0 0
          %1018 = vmatpush1.bf16.msra.mxu0 %v996
          %1019 = vmatprep.subr.bf16.mxu0 0
          %1020 = vmatpush1.bf16.msra.mxu0 %v997
          %1021 = vmatprep.subr.bf16.mxu0 0
          %1022 = vmatpush1.bf16.msra.mxu0 %v998
          %1023 = vmatprep.subr.bf16.mxu0 0
          %1024 = vmatpush1.bf16.msra.mxu0 0
          %1025 = vmatprep.subr.bf16.mxu0 0
          %1026 = vmatpush1.bf16.msra.mxu0 0
          %1027 = vmatprep.subr.bf16.mxu0 0
          %1028 = vmatpush1.bf16.msra.mxu0 0
          %1029 = vmatprep.subr.bf16.mxu0 0
          %1030 = vmatpush1.bf16.msra.mxu0 0
          %1031 = vmatprep.subr.bf16.mxu0 0
          %1032 = vmatpush1.bf16.msra.mxu0 0
          %1033 = vmatprep.subr.bf16.mxu0 0
          %1034 = vmatpush1.bf16.msra.mxu0 0
          %1035 = vmatprep.subr.bf16.mxu0 0
          %1036 = vmatpush1.bf16.msra.mxu0 0
          %1037 = vmatprep.subr.bf16.mxu0 0
          %1038 = vmatpush1.bf16.msra.mxu0 0
          %1039 = vmatprep.mubr.bf16.mxu0 0
          %1040 = vmatmul.mubr.bf16.gmra.mrb[0].mxu0 %v708
          %v1041 = vpop.f32.mrb[0].mxu0
          %v1042 = vadd.f32 0.0, %v1041
          %v1043 = vpop.f32.mrb[0].mxu0
          %v1044 = vpop.f32.mrb[0].mxu0
          %v1045 = vadd.f32 0.0, %v1044
          %v1046 = vpop.f32.mrb[0].mxu0
          %1047 = vdwg.mxu0
          %v1048 = vld [vmem:[#allocation8] sm:$0xff]
          %v1049 = vld [vmem:[#allocation8 + $0x8] sm:$0xff]
          %v1050 = vld [vmem:[#allocation8 + $0x10] sm:$0xff]
          %v1051 = vld [vmem:[#allocation8 + $0x18] sm:$0xff]
          %v1052 = vld [vmem:[#allocation8 + $0x20] sm:$0xff]
          %v1053 = vld [vmem:[#allocation8 + $0x28] sm:$0xff]
          %v1054 = vld [vmem:[#allocation8 + $0x30] sm:$0xff]
          %v1055 = vld [vmem:[#allocation8 + $0x38] sm:$0xff]
          %v1056 = vld [vmem:[#allocation8 + $0x40] sm:$0xff]
          %v1057 = vld [vmem:[#allocation8 + $0x48] sm:$0xff]
          %v1058 = vld [vmem:[#allocation8 + $0x50] sm:$0xff]
          %v1059 = vld [vmem:[#allocation8 + $0x58] sm:$0xff]
          %v1060 = vld [vmem:[#allocation8 + $0x60] sm:$0xff]
          %v1061 = vld [vmem:[#allocation8 + $0x68] sm:$0xff]
          %v1062 = vld [vmem:[#allocation8 + $0x70] sm:$0xff]
          %v1063 = vld [vmem:[#allocation8 + $0x78] sm:$0xff]
          %v1064 = vpack.c.bf16 %v928, %v927
          %v1065 = vpack.c.bf16 %v930, %v929
          %v1066 = vpack.c.bf16 %v932, %v931
          %v1067 = vpack.c.bf16 %v934, %v933
          %v1068 = vpack.c.bf16 %v936, %v935
          %v1069 = vpack.c.bf16 %v938, %v937
          %v1070 = vpack.c.bf16 %v940, %v939
          %v1071 = vpack.c.bf16 %v942, %v941
          %v1088 = vunpack.c.l.b16 %v1048
          %v1089 = vunpack.c.h.b16 %v1048
          %v1090 = vunpack.c.l.b16 %v1049
          %v1091 = vunpack.c.h.b16 %v1049
          %v1092 = vunpack.c.l.b16 %v1050
          %v1093 = vunpack.c.h.b16 %v1050
          %v1094 = vunpack.c.l.b16 %v1051
          %v1095 = vunpack.c.h.b16 %v1051
          %v1096 = vunpack.c.l.b16 %v1052
          %v1097 = vunpack.c.h.b16 %v1052
          %v1098 = vunpack.c.l.b16 %v1053
          %v1099 = vunpack.c.h.b16 %v1053
          %v1100 = vunpack.c.l.b16 %v1054
          %v1101 = vunpack.c.h.b16 %v1054
          %v1102 = vunpack.c.l.b16 %v1055
          %v1103 = vunpack.c.h.b16 %v1055
          %v1104 = vunpack.c.l.b16 %v1056
          %v1105 = vunpack.c.h.b16 %v1056
          %v1106 = vunpack.c.l.b16 %v1057
          %v1107 = vunpack.c.h.b16 %v1057
          %v1108 = vunpack.c.l.b16 %v1058
          %v1109 = vunpack.c.h.b16 %v1058
          %v1110 = vunpack.c.l.b16 %v1059
          %v1111 = vunpack.c.h.b16 %v1059
          %v1112 = vunpack.c.l.b16 %v1060
          %v1113 = vunpack.c.h.b16 %v1060
          %v1114 = vunpack.c.l.b16 %v1061
          %v1115 = vunpack.c.h.b16 %v1061
          %v1116 = vunpack.c.l.b16 %v1062
          %v1117 = vunpack.c.h.b16 %v1062
          %v1118 = vunpack.c.l.b16 %v1063
          %v1119 = vunpack.c.h.b16 %v1063
          %v1120 = vpack.c.b16 %v1090, %v1088
          %v1121 = vpack.c.b16 %v1091, %v1089
          %v1122 = vpack.c.b16 %v1094, %v1092
          %v1123 = vpack.c.b16 %v1095, %v1093
          %v1124 = vpack.c.b16 %v1098, %v1096
          %v1125 = vpack.c.b16 %v1099, %v1097
          %v1126 = vpack.c.b16 %v1102, %v1100
          %v1127 = vpack.c.b16 %v1103, %v1101
          %v1128 = vpack.c.b16 %v1106, %v1104
          %v1129 = vpack.c.b16 %v1107, %v1105
          %v1130 = vpack.c.b16 %v1110, %v1108
          %v1131 = vpack.c.b16 %v1111, %v1109
          %v1132 = vpack.c.b16 %v1114, %v1112
          %v1133 = vpack.c.b16 %v1115, %v1113
          %v1134 = vpack.c.b16 %v1118, %v1116
          %v1135 = vpack.c.b16 %v1119, %v1117
          %1152 = vmatprep.subr.bf16.mxu0 %v1121
          %1153 = vmatpush1.bf16.msra.mxu0 %v1120
          %1154 = vmatprep.subr.bf16.mxu0 %v1123
          %1155 = vmatpush1.bf16.msra.mxu0 %v1122
          %1156 = vmatprep.subr.bf16.mxu0 %v1125
          %1157 = vmatpush1.bf16.msra.mxu0 %v1124
          %1158 = vmatprep.subr.bf16.mxu0 %v1127
          %1159 = vmatpush1.bf16.msra.mxu0 %v1126
          %1160 = vmatprep.subr.bf16.mxu0 %v1129
          %1161 = vmatpush1.bf16.msra.mxu0 %v1128
          %1162 = vmatprep.subr.bf16.mxu0 %v1131
          %1163 = vmatpush1.bf16.msra.mxu0 %v1130
          %1164 = vmatprep.subr.bf16.mxu0 %v1133
          %1165 = vmatpush1.bf16.msra.mxu0 %v1132
          %1166 = vmatprep.subr.bf16.mxu0 %v1135
          %1167 = vmatpush1.bf16.msra.mxu0 %v1134
          %1168 = vmatprep.subr.bf16.mxu0 0
          %1169 = vmatpush1.bf16.msra.mxu0 0
          %1170 = vmatprep.subr.bf16.mxu0 0
          %1171 = vmatpush1.bf16.msra.mxu0 0
          %1172 = vmatprep.subr.bf16.mxu0 0
          %1173 = vmatpush1.bf16.msra.mxu0 0
          %1174 = vmatprep.subr.bf16.mxu0 0
          %1175 = vmatpush1.bf16.msra.mxu0 0
          %1176 = vmatprep.subr.bf16.mxu0 0
          %1177 = vmatpush1.bf16.msra.mxu0 0
          %1178 = vmatprep.subr.bf16.mxu0 0
          %1179 = vmatpush1.bf16.msra.mxu0 0
          %1180 = vmatprep.subr.bf16.mxu0 0
          %1181 = vmatpush1.bf16.msra.mxu0 0
          %1182 = vmatprep.subr.bf16.mxu0 0
          %1183 = vmatpush1.bf16.msra.mxu0 0
          %1184 = vmatprep.mubr.bf16.mxu0 0
          %1185 = vmatmul.mubr.bf16.gmra.mrb[0].mxu0 %v1064
          %v1186 = vpop.f32.mrb[0].mxu0
          %v1187 = vadd.f32 0.0, %v1186
          %v1188 = vpop.f32.mrb[0].mxu0
          %v1189 = vadd.f32 0.0, %v1188
          %v1190 = vpop.f32.mrb[0].mxu0
          %v1191 = vadd.f32 0.0, %v1190
          %v1192 = vpop.f32.mrb[0].mxu0
          %v1193 = vadd.f32 0.0, %v1192
          %1194 = vmatprep.mubr.bf16.mxu0 0
          %1195 = vmatmul.mubr.bf16.gmra.mrb[0].mxu0 %v1065
          %v1196 = vpop.f32.mrb[0].mxu0
          %v1197 = vadd.f32 0.0, %v1196
          %v1198 = vpop.f32.mrb[0].mxu0
          %v1199 = vadd.f32 0.0, %v1198
          %v1200 = vpop.f32.mrb[0].mxu0
          %v1201 = vadd.f32 0.0, %v1200
          %v1202 = vpop.f32.mrb[0].mxu0
          %v1203 = vadd.f32 0.0, %v1202
          %1204 = vmatprep.mubr.bf16.mxu0 0
          %1205 = vmatmul.mubr.bf16.gmra.mrb[0].mxu0 %v1066
          %v1206 = vpop.f32.mrb[0].mxu0
          %v1207 = vadd.f32 0.0, %v1206
          %v1208 = vpop.f32.mrb[0].mxu0
          %v1209 = vadd.f32 0.0, %v1208
          %v1210 = vpop.f32.mrb[0].mxu0
          %v1211 = vadd.f32 0.0, %v1210
          %v1212 = vpop.f32.mrb[0].mxu0
          %v1213 = vadd.f32 0.0, %v1212
          %1214 = vmatprep.mubr.bf16.mxu0 0
          %1215 = vmatmul.mubr.bf16.gmra.mrb[0].mxu0 %v1067
          %v1216 = vpop.f32.mrb[0].mxu0
          %v1217 = vadd.f32 0.0, %v1216
          %v1218 = vpop.f32.mrb[0].mxu0
          %v1219 = vadd.f32 0.0, %v1218
          %v1220 = vpop.f32.mrb[0].mxu0
          %v1221 = vadd.f32 0.0, %v1220
          %v1222 = vpop.f32.mrb[0].mxu0
          %v1223 = vadd.f32 0.0, %v1222
          %1224 = vmatprep.mubr.bf16.mxu0 0
          %1225 = vmatmul.mubr.bf16.gmra.mrb[0].mxu0 %v1068
          %v1226 = vpop.f32.mrb[0].mxu0
          %v1227 = vadd.f32 0.0, %v1226
          %v1228 = vpop.f32.mrb[0].mxu0
          %v1229 = vadd.f32 0.0, %v1228
          %v1230 = vpop.f32.mrb[0].mxu0
          %v1231 = vadd.f32 0.0, %v1230
          %v1232 = vpop.f32.mrb[0].mxu0
          %v1233 = vadd.f32 0.0, %v1232
          %1234 = vmatprep.mubr.bf16.mxu0 0
          %1235 = vmatmul.mubr.bf16.gmra.mrb[0].mxu0 %v1069
          %v1236 = vpop.f32.mrb[0].mxu0
          %v1237 = vadd.f32 0.0, %v1236
          %v1238 = vpop.f32.mrb[0].mxu0
          %v1239 = vadd.f32 0.0, %v1238
          %v1240 = vpop.f32.mrb[0].mxu0
          %v1241 = vadd.f32 0.0, %v1240
          %v1242 = vpop.f32.mrb[0].mxu0
          %v1243 = vadd.f32 0.0, %v1242
          %1244 = vmatprep.mubr.bf16.mxu0 0
          %1245 = vmatmul.mubr.bf16.gmra.mrb[0].mxu0 %v1070
          %v1246 = vpop.f32.mrb[0].mxu0
          %v1247 = vadd.f32 0.0, %v1246
          %v1248 = vpop.f32.mrb[0].mxu0
          %v1249 = vadd.f32 0.0, %v1248
          %v1250 = vpop.f32.mrb[0].mxu0
          %v1251 = vadd.f32 0.0, %v1250
          %v1252 = vpop.f32.mrb[0].mxu0
          %v1253 = vadd.f32 0.0, %v1252
          %1254 = vmatprep.mubr.bf16.mxu0 0
          %1255 = vmatmul.mubr.bf16.gmra.mrb[0].mxu0 %v1071
          %v1256 = vpop.f32.mrb[0].mxu0
          %v1257 = vadd.f32 0.0, %v1256
          %v1258 = vpop.f32.mrb[0].mxu0
          %v1259 = vadd.f32 0.0, %v1258
          %v1260 = vpop.f32.mrb[0].mxu0
          %v1261 = vadd.f32 0.0, %v1260
          %v1262 = vpop.f32.mrb[0].mxu0
          %v1263 = vadd.f32 0.0, %v1262
          %1264 = vdwg.mxu0
          %v1265 = vpack.c.bf16 %v1045, %v1042
          %v1266 = vpack.c.bf16 %v1191, %v1187
          %v1267 = vpack.c.bf16 %v1201, %v1197
          %v1268 = vpack.c.bf16 %v1211, %v1207
          %v1269 = vpack.c.bf16 %v1221, %v1217
          %v1270 = vpack.c.bf16 %v1231, %v1227
          %v1271 = vpack.c.bf16 %v1241, %v1237
          %v1272 = vpack.c.bf16 %v1251, %v1247
          %v1273 = vpack.c.bf16 %v1261, %v1257
          %1274 = vmatprep.subr.bf16.mxu0 0
          %1275 = vmatpush1.bf16.xpose.msra.mxu0 %v1266
          %1276 = vmatprep.subr.bf16.mxu0 0
          %1277 = vmatpush1.bf16.xpose.msra.mxu0 %v1267
          %1278 = vmatprep.subr.bf16.mxu0 0
          %1279 = vmatpush1.bf16.xpose.msra.mxu0 %v1268
          %1280 = vmatprep.subr.bf16.mxu0 0
          %1281 = vmatpush1.bf16.xpose.msra.mxu0 %v1269
          %1282 = vmatprep.subr.bf16.mxu0 0
          %1283 = vmatpush1.bf16.xpose.msra.mxu0 %v1270
          %1284 = vmatprep.subr.bf16.mxu0 0
          %1285 = vmatpush1.bf16.xpose.msra.mxu0 %v1271
          %1286 = vmatprep.subr.bf16.mxu0 0
          %1287 = vmatpush1.bf16.xpose.msra.mxu0 %v1272
          %1288 = vmatprep.subr.bf16.mxu0 0
          %1289 = vmatpush1.bf16.xpose.msra.mxu0 %v1273
          %1290 = vmatprep.subr.bf16.mxu0 0
          %1291 = vmatpush1.bf16.xpose.msra.mxu0 0
          %1292 = vmatprep.subr.bf16.mxu0 0
          %1293 = vmatpush1.bf16.xpose.msra.mxu0 0
          %1294 = vmatprep.subr.bf16.mxu0 0
          %1295 = vmatpush1.bf16.xpose.msra.mxu0 0
          %1296 = vmatprep.subr.bf16.mxu0 0
          %1297 = vmatpush1.bf16.xpose.msra.mxu0 0
          %1298 = vmatprep.subr.bf16.mxu0 0
          %1299 = vmatpush1.bf16.xpose.msra.mxu0 0
          %1300 = vmatprep.subr.bf16.mxu0 0
          %1301 = vmatpush1.bf16.xpose.msra.mxu0 0
          %1302 = vmatprep.subr.bf16.mxu0 0
          %1303 = vmatpush1.bf16.xpose.msra.mxu0 0
          %1304 = vmatprep.subr.bf16.mxu0 0
          %1305 = vmatpush1.bf16.xpose.msra.mxu0 0
          %1306 = vmatprep.mubr.bf16.mxu0 0
          %1307 = vmatmul.mubr.bf16.gmra.mrb[0].mxu0 %v1265
          %v1308 = vpop.f32.mrb[0].mxu0
          %v1309 = vadd.f32 0.0, %v1308
          %v1310 = vpop.f32.mrb[0].mxu0
          %v1311 = vpop.f32.mrb[0].mxu0
          %v1312 = vadd.f32 0.0, %v1311
          %v1313 = vpop.f32.mrb[0].mxu0
          %1314 = vdwg.mxu0
          %vm1315 = vcmp.lt.s32.totalorder %v472, 8
          %v1316 = vsel %vm1315, %v1309, -1e+30
          %v1317 = vsel %vm1315, %v1312, -1e+30
          %1318 = vmax.xlane.f32.xlu0 %v1316
          %v1319 = vpop.xlane.xlu0 %1318
          %1320 = vmax.xlane.f32.xlu0 %v1317
          %v1321 = vpop.xlane.xlu0 %1320
          %v1322 = vsub.f32 %v1316, %v1319
          %v1323 = vsub.f32 %v1317, %v1321
          %v1324 = vmul.f32 %v1322, 1.442695
          %v1325 = vpow.pop %v1324
          %v1326 = vmul.f32 %v1323, 1.442695
          %v1327 = vpow.pop %v1326
          %1328 = vadd.xlane.f32.xlu0 %v1325
          %v1329 = vpop.xlane.xlu0 %1328
          %1330 = vadd.xlane.f32.xlu0 %v1327
          %v1331 = vpop.xlane.xlu0 %1330
          %v1332 = vrcp.pop %v1329
          %v1333 = vrcp.pop %v1331
          %v1334 = vmul.f32 %v1325, %v1332
          %v1335 = vmul.f32 %v1327, %v1333
          %v1336 = vpack.c.bf16 %v1335, %v1334
          %v1337 = vpack.c.bf16 %v1193, %v1189
          %v1338 = vpack.c.bf16 %v1203, %v1199
          %v1339 = vpack.c.bf16 %v1213, %v1209
          %v1340 = vpack.c.bf16 %v1223, %v1219
          %v1341 = vpack.c.bf16 %v1233, %v1229
          %v1342 = vpack.c.bf16 %v1243, %v1239
          %v1343 = vpack.c.bf16 %v1253, %v1249
          %v1344 = vpack.c.bf16 %v1263, %v1259
          %1345 = vmatprep.subr.bf16.mxu0 0
          %1346 = vmatpush1.bf16.msra.mxu0 %v1337
          %1347 = vmatprep.subr.bf16.mxu0 0
          %1348 = vmatpush1.bf16.msra.mxu0 %v1338
          %1349 = vmatprep.subr.bf16.mxu0 0
          %1350 = vmatpush1.bf16.msra.mxu0 %v1339
          %1351 = vmatprep.subr.bf16.mxu0 0
          %1352 = vmatpush1.bf16.msra.mxu0 %v1340
          %1353 = vmatprep.subr.bf16.mxu0 0
          %1354 = vmatpush1.bf16.msra.mxu0 %v1341
          %1355 = vmatprep.subr.bf16.mxu0 0
          %1356 = vmatpush1.bf16.msra.mxu0 %v1342
          %1357 = vmatprep.subr.bf16.mxu0 0
          %1358 = vmatpush1.bf16.msra.mxu0 %v1343
          %1359 = vmatprep.subr.bf16.mxu0 0
          %1360 = vmatpush1.bf16.msra.mxu0 %v1344
          %1361 = vmatprep.subr.bf16.mxu0 0
          %1362 = vmatpush1.bf16.msra.mxu0 0
          %1363 = vmatprep.subr.bf16.mxu0 0
          %1364 = vmatpush1.bf16.msra.mxu0 0
          %1365 = vmatprep.subr.bf16.mxu0 0
          %1366 = vmatpush1.bf16.msra.mxu0 0
          %1367 = vmatprep.subr.bf16.mxu0 0
          %1368 = vmatpush1.bf16.msra.mxu0 0
          %1369 = vmatprep.subr.bf16.mxu0 0
          %1370 = vmatpush1.bf16.msra.mxu0 0
          %1371 = vmatprep.subr.bf16.mxu0 0
          %1372 = vmatpush1.bf16.msra.mxu0 0
          %1373 = vmatprep.subr.bf16.mxu0 0
          %1374 = vmatpush1.bf16.msra.mxu0 0
          %1375 = vmatprep.subr.bf16.mxu0 0
          %1376 = vmatpush1.bf16.msra.mxu0 0
          %1377 = vmatprep.mubr.bf16.mxu0 0
          %1378 = vmatmul.mubr.bf16.gmra.mrb[0].mxu0 %v1336
          %v1379 = vpop.f32.mrb[0].mxu0
          %v1380 = vadd.f32 0.0, %v1379
          %v1381 = vpop.f32.mrb[0].mxu0
          %v1382 = vpop.f32.mrb[0].mxu0
          %v1383 = vadd.f32 0.0, %v1382
          %v1384 = vpop.f32.mrb[0].mxu0
          %1385 = vdwg.mxu0
          %1386 = vst [vmem:[#allocation12] sm:$0xff] %v624
          %1387 = vst [vmem:[#allocation12 + $0x10] sm:$0xff] %v627
          %1388 = vst [vmem:[#allocation12 + $0x8] sm:$0xff] %v1380
          %1389 = vst [vmem:[#allocation12 + $0x18] sm:$0xff] %v1383
          %v1390 = vld [vmem:[#allocation12] sm:$0xff]
          %v1391 = vld [vmem:[#allocation12 + $0x8] sm:$0xff]
          %v1392 = vld [vmem:[#allocation12 + $0x10] sm:$0xff]
          %v1393 = vld [vmem:[#allocation12 + $0x18] sm:$0xff]
          %v1394 = vld [vmem:[#allocation9] sm:$0xf]
          %v1395 = vld [vmem:[#allocation9 + $0x4] sm:$0xf]
          %v1396 = vld [vmem:[#allocation9 + $0x8] sm:$0xf]
          %v1397 = vld [vmem:[#allocation9 + $0xc] sm:$0xf]
          %v1398 = vld [vmem:[#allocation9 + $0x10] sm:$0xf]
          %v1399 = vld [vmem:[#allocation9 + $0x14] sm:$0xf]
          %v1400 = vld [vmem:[#allocation9 + $0x18] sm:$0xf]
          %v1401 = vld [vmem:[#allocation9 + $0x1c] sm:$0xf]
          %v1402 = vld [vmem:[#allocation9 + $0x20] sm:$0xf]
          %v1403 = vld [vmem:[#allocation9 + $0x24] sm:$0xf]
          %v1404 = vld [vmem:[#allocation9 + $0x28] sm:$0xf]
          %v1405 = vld [vmem:[#allocation9 + $0x2c] sm:$0xf]
          %v1406 = vld [vmem:[#allocation9 + $0x30] sm:$0xf]
          %v1407 = vld [vmem:[#allocation9 + $0x34] sm:$0xf]
          %v1408 = vld [vmem:[#allocation9 + $0x38] sm:$0xf]
          %v1409 = vld [vmem:[#allocation9 + $0x3c] sm:$0xf]
          %v1410 = vld [vmem:[#allocation9 + $0x40] sm:$0xf]
          %v1411 = vld [vmem:[#allocation9 + $0x44] sm:$0xf]
          %v1412 = vld [vmem:[#allocation9 + $0x48] sm:$0xf]
          %v1413 = vld [vmem:[#allocation9 + $0x4c] sm:$0xf]
          %v1414 = vld [vmem:[#allocation9 + $0x50] sm:$0xf]
          %v1415 = vld [vmem:[#allocation9 + $0x54] sm:$0xf]
          %v1416 = vld [vmem:[#allocation9 + $0x58] sm:$0xf]
          %v1417 = vld [vmem:[#allocation9 + $0x5c] sm:$0xf]
          %v1418 = vld [vmem:[#allocation9 + $0x60] sm:$0xf]
          %v1419 = vld [vmem:[#allocation9 + $0x64] sm:$0xf]
          %v1420 = vld [vmem:[#allocation9 + $0x68] sm:$0xf]
          %v1421 = vld [vmem:[#allocation9 + $0x6c] sm:$0xf]
          %v1422 = vld [vmem:[#allocation9 + $0x70] sm:$0xf]
          %v1423 = vld [vmem:[#allocation9 + $0x74] sm:$0xf]
          %v1424 = vld [vmem:[#allocation9 + $0x78] sm:$0xf]
          %v1425 = vld [vmem:[#allocation9 + $0x7c] sm:$0xf]
          %v1426 = vpack.c.bf16 %v1392, %v1390
          %v1427 = vpack.c.bf16 %v1393, %v1391
          %v1428 = vld [vmem:[%s7] sm:$0x1]
          %v1430 = vlaneseq
          %v1431 = vshrl.u32 %v1430, 7
          %v1432 = vsub.s32 0, %v1431
          %v1433 = vrot.slane %v1428, %v1432
          %v1467 = vunpack.c.l.b16 %v1394
          %v1468 = vunpack.c.l.b16 %v1395
          %v1469 = vunpack.c.l.b16 %v1396
          %v1470 = vunpack.c.l.b16 %v1397
          %v1471 = vunpack.c.l.b16 %v1398
          %v1472 = vunpack.c.l.b16 %v1399
          %v1473 = vunpack.c.l.b16 %v1400
          %v1474 = vunpack.c.l.b16 %v1401
          %v1475 = vunpack.c.l.b16 %v1402
          %v1476 = vunpack.c.l.b16 %v1403
          %v1477 = vunpack.c.l.b16 %v1404
          %v1478 = vunpack.c.l.b16 %v1405
          %v1479 = vunpack.c.l.b16 %v1406
          %v1480 = vunpack.c.l.b16 %v1407
          %v1481 = vunpack.c.l.b16 %v1408
          %v1482 = vunpack.c.l.b16 %v1409
          %v1483 = vunpack.c.l.b16 %v1410
          %v1484 = vunpack.c.l.b16 %v1411
          %v1485 = vunpack.c.l.b16 %v1412
          %v1486 = vunpack.c.l.b16 %v1413
          %v1487 = vunpack.c.l.b16 %v1414
          %v1488 = vunpack.c.l.b16 %v1415
          %v1489 = vunpack.c.l.b16 %v1416
          %v1490 = vunpack.c.l.b16 %v1417
          %v1491 = vunpack.c.l.b16 %v1418
          %v1492 = vunpack.c.l.b16 %v1419
          %v1493 = vunpack.c.l.b16 %v1420
          %v1494 = vunpack.c.l.b16 %v1421
          %v1495 = vunpack.c.l.b16 %v1422
          %v1496 = vunpack.c.l.b16 %v1423
          %v1497 = vunpack.c.l.b16 %v1424
          %v1498 = vunpack.c.l.b16 %v1425
          %v1499 = vpack.c.b16 %v1468, %v1467
          %v1500 = vpack.c.b16 %v1470, %v1469
          %v1501 = vpack.c.b16 %v1472, %v1471
          %v1502 = vpack.c.b16 %v1474, %v1473
          %v1503 = vpack.c.b16 %v1476, %v1475
          %v1504 = vpack.c.b16 %v1478, %v1477
          %v1505 = vpack.c.b16 %v1480, %v1479
          %v1506 = vpack.c.b16 %v1482, %v1481
          %v1507 = vpack.c.b16 %v1484, %v1483
          %v1508 = vpack.c.b16 %v1486, %v1485
          %v1509 = vpack.c.b16 %v1488, %v1487
          %v1510 = vpack.c.b16 %v1490, %v1489
          %v1511 = vpack.c.b16 %v1492, %v1491
          %v1512 = vpack.c.b16 %v1494, %v1493
          %v1513 = vpack.c.b16 %v1496, %v1495
          %v1514 = vpack.c.b16 %v1498, %v1497
          %1531 = vmatprep.subr.bf16.mxu0 0
          %1532 = vmatpush1.bf16.msra.mxu0 %v1499
          %1533 = vmatprep.subr.bf16.mxu0 0
          %1534 = vmatpush1.bf16.msra.mxu0 %v1500
          %1535 = vmatprep.subr.bf16.mxu0 0
          %1536 = vmatpush1.bf16.msra.mxu0 %v1501
          %1537 = vmatprep.subr.bf16.mxu0 0
          %1538 = vmatpush1.bf16.msra.mxu0 %v1502
          %1539 = vmatprep.subr.bf16.mxu0 0
          %1540 = vmatpush1.bf16.msra.mxu0 %v1503
          %1541 = vmatprep.subr.bf16.mxu0 0
          %1542 = vmatpush1.bf16.msra.mxu0 %v1504
          %1543 = vmatprep.subr.bf16.mxu0 0
          %1544 = vmatpush1.bf16.msra.mxu0 %v1505
          %1545 = vmatprep.subr.bf16.mxu0 0
          %1546 = vmatpush1.bf16.msra.mxu0 %v1506
          %1547 = vmatprep.subr.bf16.mxu0 0
          %1548 = vmatpush1.bf16.msra.mxu0 %v1507
          %1549 = vmatprep.subr.bf16.mxu0 0
          %1550 = vmatpush1.bf16.msra.mxu0 %v1508
          %1551 = vmatprep.subr.bf16.mxu0 0
          %1552 = vmatpush1.bf16.msra.mxu0 %v1509
          %1553 = vmatprep.subr.bf16.mxu0 0
          %1554 = vmatpush1.bf16.msra.mxu0 %v1510
          %1555 = vmatprep.subr.bf16.mxu0 0
          %1556 = vmatpush1.bf16.msra.mxu0 %v1511
          %1557 = vmatprep.subr.bf16.mxu0 0
          %1558 = vmatpush1.bf16.msra.mxu0 %v1512
          %1559 = vmatprep.subr.bf16.mxu0 0
          %1560 = vmatpush1.bf16.msra.mxu0 %v1513
          %1561 = vmatprep.subr.bf16.mxu0 0
          %1562 = vmatpush1.bf16.msra.mxu0 %v1514
          %1563 = vmatprep.mubr.bf16.mxu0 %v1427
          %1564 = vmatmul.mubr.bf16.gmra.mrb[0].mxu0 %v1426
          %v1565 = vpop.f32.mrb[0].mxu0
          %v1566 = vadd.f32 %v1433, %v1565
          %v1567 = vpop.f32.mrb[0].mxu0
          %v1568 = vpop.f32.mrb[0].mxu0
          %v1569 = vadd.f32 %v1433, %v1568
          %v1570 = vpop.f32.mrb[0].mxu0
          %1571 = vdwg.mxu0
          %1572 = vst [vmem:[#allocation11] sm:$0xff] %v1566
          %1573 = vst [vmem:[#allocation11 + $0x8] sm:$0xff] %v1569
        $region76: #{tpu_custom_call.1} parent=51 // pred_fallthru
          _
        // Predicated region
        $region77: #{tpu_custom_call.1} parent=51 // pred_check
          %p1574 = pneg %p214
        $region78: #{tpu_custom_call.1} parent=51 // pred_check_branch
          %1576 = sbr.rel (%p1574) target = $region80
        $region79: #{tpu_custom_call.1} parent=51 // pred_region
          %s1578 = ssub.s32 256, 256
          %1579 = vsyncadd [#allocation5], %s1578
          %s1580 = sshll.u32 [#allocation11], 4
          %s1581 = int_to_ptr.vmem [resolvable:$true] %s1580
          %1586 = dma.vmem_to_hbm [thread:$0]  %s1581, 256, %s8, [#allocation5], 128, 128, 8
        $region80: #{tpu_custom_call.1} parent=51 // pred_fallthru
          _
        // Predicated region
        $region81: #{tpu_custom_call.1} parent=51 // pred_check
          %p1587 = pneg %p235
        $region82: #{tpu_custom_call.1} parent=51 // pred_check_branch
          %1589 = sbr.rel (%p1587) target = $region84
        $region83: #{tpu_custom_call.1} parent=51 // pred_region
          %s1591 = ssub.s32 512, 512
          %1592 = vsyncadd [#allocation13], %s1591
          %s1593 = sshll.u32 [#allocation12], 4
          %s1594 = int_to_ptr.vmem [resolvable:$true] %s1593
          %1599 = dma.vmem_to_hbm [thread:$0]  %s1594, 512, %s9, [#allocation13], 256, 256, 16
        $region84: #{tpu_custom_call.1} parent=51 // pred_fallthru
          _
        // Predicated region
        $region85: #{tpu_custom_call.1} parent=51 // pred_check
          %p1600 = pneg %p214
        $region86: #{tpu_custom_call.1} parent=51 // pred_check_branch
          %1602 = sbr.rel (%p1600) target = $region88
        $region87: #{tpu_custom_call.1} parent=51 // pred_region
          %1603 = dma.done [#allocation5], 256
        $region88: #{tpu_custom_call.1} parent=51 // pred_fallthru
          _
        // Predicated region
        $region89: #{tpu_custom_call.1} parent=51 // pred_check
          %p1604 = pneg %p235
        $region90: #{tpu_custom_call.1} parent=51 // pred_check_branch
          %1606 = sbr.rel (%p1604) target = $region92
        $region91: #{tpu_custom_call.1} parent=51 // pred_region
          %1607 = dma.done [#allocation13], 512
        $region92: #{tpu_custom_call.1} parent=51 // pred_fallthru
          _
      $region52: #{tpu_custom_call.1} parent=5 // pred_fallthru
        _
      %p1608 = scmp.le.s32.totalorder 2, %s23
      // Predicated region
      $region93: #{tpu_custom_call.1} parent=5 // pred_check
        %p1609 = pneg %p1608
      $region94: #{tpu_custom_call.1} parent=5 // pred_check_branch
        %1611 = sbr.rel (%p1609) target = $region96
      $region95: #{tpu_custom_call.1} parent=5 // pred_region
        %s1612 = ssub.s32 %s23, 2
      $region96: #{tpu_custom_call.1} parent=5 // pred_fallthru
        _
    $region6: #{tpu_custom_call.1} parent=1 // loop_footer
      %s27 = sadd.s32 1, %s23
    $region7: #{tpu_custom_call.1} parent=1 // loop_footer_branch
      %22 = sbr.rel target = $region3
    $region8: #{tpu_custom_call.1} parent=1 // loop_exit
      _
    %1613 = vsyncpa [#allocation4], 1
    %s1614 = scalar_lea.sflag [#allocation4], 1
    %1615 = vsyncpa %s1614, 1
    %1616 = vsyncpa [#allocation7], 1
    %1617 = vsyncpa [#allocation10], 1
    %1618 = vsyncpa [#allocation5], 1
    %s1619 = scalar_lea.sflag [#allocation5], 1
    %1620 = vsyncpa %s1619, 1
    %1621 = vsyncpa [#allocation13], 1

</llo_original>
